<compile_context>
chip_gen: v5e
topology: v5e:2x2
jax: 0.10.0
libtpu: 0.0.40
codegen_flags: <defaults>
</compile_context>

<pallas_src>
import functools
import math

import jax
import jax.numpy as jnp
from jax.experimental import pallas as pl
from jax.experimental.pallas import tpu as pltpu


# ------------------------------ helpers --------------------------------------


def _round_up(x, m):
    return ((x + m - 1) // m) * m


def _pad2(a, rows, cols):
    out = jnp.zeros((rows, cols), a.dtype)
    return out.at[: a.shape[0], : a.shape[1]].set(a)


# ----------------------------- Pallas kernel ---------------------------------


def _graphormer_layer_kernel(x_ref, bias_ref, valid_ref,
                             w_ref, b_ref, bn_scale_ref, bn_shift_ref,
                             o_ref, h_ref, *, d_pad):
    """One grid step == one TransformerConv layer; h stays resident in VMEM scratch."""
    l = pl.program_id(0)
    num_layers = pl.num_programs(0)

    @pl.when(l == 0)
    def _():
        h_ref[...] = x_ref[...]

    h_lo = h_ref[...].astype(jnp.bfloat16)                    # [Np, D]

    w = w_ref[0]                                              # [D, 4D] bf16 (Wq|Wk|Wv|Ws)
    b = b_ref[0]                                              # [1, 4D] f32

    # One wide MXU matmul for q/k/v/skip (better MXU occupancy than 4 narrow ones).
    qkvs = jnp.dot(h_lo, w, preferred_element_type=jnp.float32) + b   # [Np, 4D]
    q = qkvs[:, 0 * d_pad:1 * d_pad]        # 1/sqrt(C) already folded into Wq/bq
    k = qkvs[:, 1 * d_pad:2 * d_pad]
    v = qkvs[:, 2 * d_pad:3 * d_pad]
    skip = qkvs[:, 3 * d_pad:4 * d_pad]

    # scores[i, j] = q_i . k_j  (contract last dims; no materialized k^T)
    s = jax.lax.dot_general(
        q.astype(jnp.bfloat16), k.astype(jnp.bfloat16),
        (((1,), (1,)), ((), ())),
        preferred_element_type=jnp.float32,
    )
    s = s + bias_ref[...]                   # bf16 additive mask (0 / -1e30), implicit f32 upcast

    m = jnp.max(s, axis=-1, keepdims=True)
    p = jnp.exp(s - m)                      # masked entries underflow to exactly 0
    den = jnp.sum(p, axis=-1, keepdims=True)   # >= 1 (max entry -> exp(0))
    num = jnp.dot(p.astype(jnp.bfloat16), v.astype(jnp.bfloat16),
                  preferred_element_type=jnp.float32)
    # EUP reciprocal; 'valid' zeroes rows with no incoming edges (PyG semantics).
    attn = num * (pl.reciprocal(den, approx=True) * valid_ref[...])

    out = attn + skip

    @pl.when(l < num_layers - 1)
    def _():
        # BatchNorm1d (eval) folded to scale/shift -> ReLU -> dropout (identity in eval).
        h_ref[...] = jnp.maximum(out * bn_scale_ref[0] + bn_shift_ref[0], 0.0)

    @pl.when(l == num_layers - 1)
    def _():
        o_ref[...] = out


# ------------------------------ JAX wrappers -----------------------------------


def prepare_graphormer(params, edge_index, num_nodes):
    """One-time glue: pad/stack/fuse weights, densify edge_index into an additive bias."""
    convs, bns = params["convs"], params["bns"]
    num_layers = len(convs)

    dims = [convs[0]["wq"].shape[0]] + [c["wq"].shape[1] for c in convs]
    d_pad = max(_round_up(d, 128) for d in dims)
    n_pad = _round_up(num_nodes, 128)

    src = edge_index[0]                               # j (message source)
    dst = edge_index[1]                               # i (target / attention center)
    adj = jnp.zeros((n_pad, n_pad), jnp.float32).at[dst, src].set(1.0)
    bias = jnp.where(adj > 0.0, 0.0, -1e30).astype(jnp.bfloat16)
    valid = (jnp.sum(adj, axis=1, keepdims=True) > 0.0).astype(jnp.float32)

    w_layers, b_layers = [], []
    for c in convs:
        c_out = c["wq"].shape[1]
        scale = 1.0 / math.sqrt(c_out)                # fold 1/sqrt(C) into the q projection
        wq = _pad2(c["wq"] * scale, d_pad, d_pad)
        bq = _pad2(c["bq"] * scale, 1, d_pad)
        wk = _pad2(c["wk"], d_pad, d_pad)
        bk = _pad2(c["bk"], 1, d_pad)
        wv = _pad2(c["wv"], d_pad, d_pad)
        bv = _pad2(c["bv"], 1, d_pad)
        ws = _pad2(c["ws"], d_pad, d_pad)
        bs = _pad2(c["bs"], 1, d_pad)
        w_layers.append(jnp.concatenate([wq, wk, wv, ws], axis=1))
        b_layers.append(jnp.concatenate([bq, bk, bv, bs], axis=1))
    w_fused = jnp.stack(w_layers).astype(jnp.bfloat16)        # [L, D, 4D]
    b_fused = jnp.stack(b_layers).astype(jnp.float32)         # [L, 1, 4D]

    scales = [_pad2(b["scale"], 1, d_pad) for b in bns]
    shifts = [_pad2(b["shift"], 1, d_pad) for b in bns]
    scales.append(jnp.ones((1, d_pad), jnp.float32))          # identity entry for last layer
    shifts.append(jnp.zeros((1, d_pad), jnp.float32))         # (gated off with pl.when)
    bn_scale = jnp.stack(scales[:num_layers])                 # [L, 1, D]
    bn_shift = jnp.stack(shifts[:num_layers])                 # [L, 1, D]

    out_ch = convs[-1]["wq"].shape[1]
    return dict(bias=bias, valid=valid, w_fused=w_fused, b_fused=b_fused,
                bn_scale=bn_scale, bn_shift=bn_shift, out_ch=out_ch)


@jax.jit
def _graphormer_apply(x, bias, valid, w_fused, b_fused, bn_scale, bn_shift):
    n_pad = bias.shape[0]
    d_pad = w_fused.shape[1]
    num_layers = w_fused.shape[0]

    n, in_ch = x.shape
    x_pad = jnp.zeros((n_pad, d_pad), jnp.float32).at[:n, :in_ch].set(x.astype(jnp.float32))

    kernel = functools.partial(_graphormer_layer_kernel, d_pad=d_pad)

    # --- generation-aware scoped-VMEM budget (85% of physical, sized from residents) ----
    n2 = n_pad * n_pad
    nd = n_pad * d_pad
    resident = (nd * 4            # x
                + n2 * 2          # bias (bf16, no f32 copy)
                + n_pad * 128 * 4  # valid (lane-padded)
                + 2 * nd * 4      # output + h scratch
                + 2 * (d_pad * 4 * d_pad * 2 + 4 * d_pad * 4 + 2 * d_pad * 4))  # 2 weight bufs
    interm = 2 * n2 * 4 + n_pad * 4 * d_pad * 4 + 6 * nd * 4
    try:
        phys_vmem = int(pltpu.get_tpu_info().vmem_capacity_bytes)
    except Exception:  # pragma: no cover - conservative fallback (v7x-sized)
        phys_vmem = 64 * 1024 * 1024
    vmem_limit = max(16 * 1024 * 1024,
                     min(int(0.85 * phys_vmem), int(1.5 * (resident + interm))))

    flops = num_layers * (2 * n_pad * d_pad * (4 * d_pad) + 2 * 2 * n2 * d_pad)
    bytes_accessed = (nd * 4 + n2 * 2 + n_pad * 4
                      + w_fused.size * 2 + b_fused.size * 4
                      + bn_scale.size * 4 + bn_shift.size * 4 + nd * 4)
    cost = pl.CostEstimate(flops=int(flops),
                           transcendentals=int(num_layers * (n2 + n_pad)),
                           bytes_accessed=int(bytes_accessed))

    grid_spec = pltpu.PrefetchScalarGridSpec(
        num_scalar_prefetch=0,
        grid=(num_layers,),
        in_specs=[
            pl.BlockSpec((n_pad, d_pad), lambda l: (0, 0)),              # x      (resident)
            pl.BlockSpec((n_pad, n_pad), lambda l: (0, 0)),              # bias   (resident)
            pl.BlockSpec((n_pad, 1), lambda l: (0, 0)),                  # valid  (resident)
            pl.BlockSpec((1, d_pad, 4 * d_pad), lambda l: (l, 0, 0)),    # weights (streamed)
            pl.BlockSpec((1, 1, 4 * d_pad), lambda l: (l, 0, 0)),        # biases  (streamed)
            pl.BlockSpec((1, 1, d_pad), lambda l: (l, 0, 0)),            # bn scale
            pl.BlockSpec((1, 1, d_pad), lambda l: (l, 0, 0)),            # bn shift
        ],
        out_specs=pl.BlockSpec((n_pad, d_pad), lambda l: (0, 0)),
        scratch_shapes=[pltpu.VMEM((n_pad, d_pad), jnp.float32)],        # resident h
    )

    return pl.pallas_call(
        kernel,
        out_shape=jax.ShapeDtypeStruct((n_pad, d_pad), jnp.float32),
        grid_spec=grid_spec,
        compiler_params=pltpu.CompilerParams(
            dimension_semantics=("arbitrary",),
            vmem_limit_bytes=vmem_limit),
        cost_estimate=cost,
    )(x_pad, bias, valid, w_fused, b_fused, bn_scale, bn_shift)


def graphormer_forward(x, edge_index, params, prep=None):
    """Graphormer forward (eval mode). x: [N, F] float32, edge_index: [2, E] int32."""
    if prep is None:
        prep = prepare_graphormer(params, edge_index, x.shape[0])
    out_pad = _graphormer_apply(x, prep["bias"], prep["valid"], prep["w_fused"],
                                prep["b_fused"], prep["bn_scale"], prep["bn_shift"])
    return out_pad[: x.shape[0], : prep["out_ch"]]


# --------------------------- pure-JAX reference -------------------------------


def graphormer_reference(x, edge_index, params):
    n = x.shape[0]
    src, dst = edge_index[0], edge_index[1]
    adj = jnp.zeros((n, n), jnp.float32).at[dst, src].set(1.0)
    mask = adj > 0.0
    convs, bns = params["convs"], params["bns"]
    h = x
    for li, p in enumerate(convs):
        c = p["wq"].shape[1]
        q = h @ p["wq"] + p["bq"]
        k = h @ p["wk"] + p["bk"]
        v = h @ p["wv"] + p["bv"]
        s = (q @ k.T) / math.sqrt(c)
        s = jnp.where(mask, s, -jnp.inf)
        m = jnp.max(s, axis=-1, keepdims=True)
        m = jnp.where(jnp.isfinite(m), m, 0.0)
        pw = jnp.where(mask, jnp.exp(s - m), 0.0)
        den = jnp.sum(pw, axis=-1, keepdims=True)
        attn = (pw @ v) / jnp.where(den > 0.0, den, 1.0)
        out = attn + (h @ p["ws"] + p["bs"])
        if li < len(convs) - 1:
            out = out * bns[li]["scale"] + bns[li]["shift"]
            out = jnp.maximum(out, 0.0)
        h = out
    return h


# --------------------------- deterministic init --------------------------------


def _init_linear(key, din, dout):
    kw, kb = jax.random.split(key)
    w = jax.random.normal(kw, (din, dout), jnp.float32) * (1.0 / math.sqrt(din))
    b = jax.random.normal(kb, (1, dout), jnp.float32) * 0.01
    return w, b


def init_graphormer(key, in_channels, hidden_channels, out_channels, num_layers):
    dims = [(in_channels, hidden_channels)]
    dims += [(hidden_channels, hidden_channels)] * (num_layers - 2)
    dims += [(hidden_channels, out_channels)]

    convs, bns = [], []
    keys = jax.random.split(key, len(dims))
    bn_eps = 1e-5
    for li, (din, dout) in enumerate(dims):
        kq, kk, kv, ks = jax.random.split(keys[li], 4)
        wq, bq = _init_linear(kq, din, dout)
        wk, bk = _init_linear(kk, din, dout)
        wv, bv = _init_linear(kv, din, dout)
        ws, bs = _init_linear(ks, din, dout)
        convs.append(dict(wq=wq, bq=bq, wk=wk, bk=bk, wv=wv, bv=bv, ws=ws, bs=bs))
        if li < len(dims) - 1:
            # BatchNorm1d freshly-initialized running stats (mean=0, var=1, gamma=1, beta=0)
            gamma = jnp.ones((1, dout), jnp.float32)
            beta = jnp.zeros((1, dout), jnp.float32)
            r_mean = jnp.zeros((1, dout), jnp.float32)
            r_var = jnp.ones((1, dout), jnp.float32)
            scale = gamma / jnp.sqrt(r_var + bn_eps)
            shift = beta - r_mean * scale
            bns.append(dict(scale=scale, shift=shift))
    return dict(convs=convs, bns=bns)


# ----------------------------------- main ---------------------------------------


if __name__ == "__main__":
    N = 16                 # number of nodes
    IN_CH = 16
    HIDDEN = 32
    OUT_CH = 8
    NUM_LAYERS = 3
    # dropout p is irrelevant in eval mode (identity); use_pred=False.

    key = jax.random.PRNGKey(0)
    k_param, k_x = jax.random.split(key)

    params = init_graphormer(k_param, IN_CH, HIDDEN, OUT_CH, NUM_LAYERS)
    x = jax.random.normal(k_x, (N, IN_CH), jnp.float32)

    # Deterministic edge set: bidirectional ring + a few long-range edges.
    ar = jnp.arange(N, dtype=jnp.int32)
    src = jnp.concatenate([ar, (ar + 1) % N, jnp.array([0, 3, 5, 7, 2, 9], jnp.int32)])
    dst = jnp.concatenate([(ar + 1) % N, ar, jnp.array([8, 12, 1, 14, 10, 4], jnp.int32)])
    edge_index = jnp.stack([src, dst]).astype(jnp.int32)   # [2, E], row0=src, row1=dst

    prep = prepare_graphormer(params, edge_index, N)       # one-time glue (hoisted)
    out = graphormer_forward(x, edge_index, params, prep=prep)
    out = jax.block_until_ready(out)

    assert out.shape == (N, OUT_CH), out.shape
    assert bool(jnp.all(jnp.isfinite(out)))

    # Loose check vs f32 reference (kernel uses bf16 matmul operands + approx recip).
    ref = graphormer_reference(x, edge_index, params)
    err = float(jnp.max(jnp.abs(out - ref)))
    scale = float(jnp.max(jnp.abs(ref))) + 1e-6
    assert err <= 0.15 * scale + 0.05, (err, scale)

    print("KERNEL_OK")
</pallas_src>

<mosaic_0001>
module attributes {stable_mosaic.version = 11 : i64} {
  func.func @_graphormer_layer_kernel(%arg0: i32, %arg1: memref<128x128xf32, #tpu.memory_space<vmem>>, %arg2: memref<128x128xbf16, #tpu.memory_space<vmem>>, %arg3: memref<128x1xf32, #tpu.memory_space<vmem>>, %arg4: memref<1x128x512xbf16, #tpu.memory_space<vmem>>, %arg5: memref<1x1x512xf32, #tpu.memory_space<vmem>>, %arg6: memref<1x1x128xf32, #tpu.memory_space<vmem>>, %arg7: memref<1x1x128xf32, #tpu.memory_space<vmem>>, %arg8: memref<128x128xf32, #tpu.memory_space<vmem>>, %arg9: memref<128x128xf32, #tpu.memory_space<vmem>>) attributes {dimension_semantics = [#tpu.dimension_semantics<arbitrary>], iteration_bounds = array<i64: 3>, scalar_prefetch = 0 : i64, scratch_operands = 1 : i64, tpu.core_type = #tpu.core_type<tc>, window_params = [{pipeline_mode = #tpu.pipeline_mode<synchronous>, transform_indices = @transform_0, window_bounds = array<i64: 128, 128>}, {pipeline_mode = #tpu.pipeline_mode<synchronous>, transform_indices = @transform_1, window_bounds = array<i64: 128, 128>}, {pipeline_mode = #tpu.pipeline_mode<synchronous>, transform_indices = @transform_2, window_bounds = array<i64: 128, 1>}, {transform_indices = @transform_3, window_bounds = array<i64: 1, 128, 512>}, {transform_indices = @transform_4, window_bounds = array<i64: 1, 1, 512>}, {transform_indices = @transform_5, window_bounds = array<i64: 1, 1, 128>}, {transform_indices = @transform_6, window_bounds = array<i64: 1, 1, 128>}, {pipeline_mode = #tpu.pipeline_mode<synchronous>, transform_indices = @transform_7, window_bounds = array<i64: 128, 128>}]} {
    %c0_i32 = arith.constant 0 : i32
    %0 = arith.cmpi eq, %arg0, %c0_i32 : i32
    %1 = arith.extui %0 : i1 to i32
    %c0_i32_0 = arith.constant 0 : i32
    %2 = arith.cmpi ne, %1, %c0_i32_0 : i32
    scf.if %2 {
      %c0_19 = arith.constant 0 : index
      %c0_20 = arith.constant 0 : index
      %44 = vector.load %arg1[%c0_19, %c0_20] : memref<128x128xf32, #tpu.memory_space<vmem>>, vector<128x128xf32>
      %c0_21 = arith.constant 0 : index
      %c0_22 = arith.constant 0 : index
      %45 = vector.load %arg9[%c0_21, %c0_22] : memref<128x128xf32, #tpu.memory_space<vmem>>, vector<128x128xf32>
      tpu.vector_store %arg9[%c0_21, %c0_22], %44 {strides = array<i32>} : memref<128x128xf32, #tpu.memory_space<vmem>>, vector<128x128xf32>,
    } else {
    }
    %c0 = arith.constant 0 : index
    %c0_1 = arith.constant 0 : index
    %3 = vector.load %arg9[%c0, %c0_1] : memref<128x128xf32, #tpu.memory_space<vmem>>, vector<128x128xf32>
    %4 = arith.truncf %3 : vector<128x128xf32> to vector<128x128xbf16>
    %c0_2 = arith.constant 0 : index
    %c0_3 = arith.constant 0 : index
    %c0_4 = arith.constant 0 : index
    %5 = vector.load %arg4[%c0_2, %c0_3, %c0_4] : memref<1x128x512xbf16, #tpu.memory_space<vmem>>, vector<1x128x512xbf16>
    %6 = vector.shape_cast %5 : vector<1x128x512xbf16> to vector<128x512xbf16>
    %c0_5 = arith.constant 0 : index
    %c0_6 = arith.constant 0 : index
    %c0_7 = arith.constant 0 : index
    %7 = vector.load %arg5[%c0_5, %c0_6, %c0_7] : memref<1x1x512xf32, #tpu.memory_space<vmem>>, vector<1x1x512xf32>
    %8 = vector.shape_cast %7 : vector<1x1x512xf32> to vector<1x512xf32>
    %cst = arith.constant dense<0.000000e+00> : vector<128x512xf32>
    %9 = tpu.matmul %4, %6, %cst {dimension_numbers = #tpu.dot_dimension_numbers<[1], [0], [0], [1], [0, 0, 1, 1], [], []>} : vector<128x128xbf16>, vector<128x512xbf16>, vector<128x512xf32> -> vector<128x512xf32>
    %10 = vector.broadcast %8 : vector<1x512xf32> to vector<128x512xf32>
    %11 = arith.addf %9, %10 : vector<128x512xf32>
    %12 = vector.extract_strided_slice %11 {offsets = [0, 0], sizes = [128, 128], strides = [1, 1]} : vector<128x512xf32> to vector<128x128xf32>
    %13 = vector.extract_strided_slice %11 {offsets = [0, 128], sizes = [128, 128], strides = [1, 1]} : vector<128x512xf32> to vector<128x128xf32>
    %14 = vector.extract_strided_slice %11 {offsets = [0, 256], sizes = [128, 128], strides = [1, 1]} : vector<128x512xf32> to vector<128x128xf32>
    %15 = vector.extract_strided_slice %11 {offsets = [0, 384], sizes = [128, 128], strides = [1, 1]} : vector<128x512xf32> to vector<128x128xf32>
    %16 = arith.truncf %12 : vector<128x128xf32> to vector<128x128xbf16>
    %17 = arith.truncf %13 : vector<128x128xf32> to vector<128x128xbf16>
    %cst_8 = arith.constant dense<0.000000e+00> : vector<128x128xf32>
    %18 = tpu.matmul %16, %17, %cst_8 {dimension_numbers = #tpu.dot_dimension_numbers<[1], [1], [0], [0], [0, 0, 1, 0], [], []>} : vector<128x128xbf16>, vector<128x128xbf16>, vector<128x128xf32> -> vector<128x128xf32>
    %c0_9 = arith.constant 0 : index
    %c0_10 = arith.constant 0 : index
    %19 = vector.load %arg2[%c0_9, %c0_10] : memref<128x128xbf16, #tpu.memory_space<vmem>>, vector<128x128xbf16>
    %20 = arith.extf %19 : vector<128x128xbf16> to vector<128x128xf32>
    %21 = arith.addf %18, %20 : vector<128x128xf32>
    %cst_11 = arith.constant dense<0xFF800000> : vector<128xf32>
    %22 = vector.multi_reduction <maximumf>, %21, %cst_11 [1] : vector<128x128xf32> to vector<128xf32>
    %23 = vector.shape_cast %22 : vector<128xf32> to vector<128x1xf32>
    %24 = vector.broadcast %23 : vector<128x1xf32> to vector<128x128xf32>
    %25 = arith.subf %21, %24 : vector<128x128xf32>
    %26 = math.exp %25 : vector<128x128xf32>
    %cst_12 = arith.constant dense<0.000000e+00> : vector<128xf32>
    %27 = vector.multi_reduction <add>, %26, %cst_12 [1] : vector<128x128xf32> to vector<128xf32>
    %28 = vector.shape_cast %27 : vector<128xf32> to vector<128x1xf32>
    %29 = arith.truncf %26 : vector<128x128xf32> to vector<128x128xbf16>
    %30 = arith.truncf %14 : vector<128x128xf32> to vector<128x128xbf16>
    %cst_13 = arith.constant dense<0.000000e+00> : vector<128x128xf32>
    %31 = tpu.matmul %29, %30, %cst_13 {dimension_numbers = #tpu.dot_dimension_numbers<[1], [0], [0], [1], [0, 0, 1, 1], [], []>} : vector<128x128xbf16>, vector<128x128xbf16>, vector<128x128xf32> -> vector<128x128xf32>
    %32 = tpu.reciprocal %28 {approx = true} : vector<128x1xf32> -> vector<128x1xf32>
    %c0_14 = arith.constant 0 : index
    %c0_15 = arith.constant 0 : index
    %33 = vector.load %arg3[%c0_14, %c0_15] : memref<128x1xf32, #tpu.memory_space<vmem>>, vector<128x1xf32>
    %34 = arith.mulf %32, %33 : vector<128x1xf32>
    %35 = vector.broadcast %34 : vector<128x1xf32> to vector<128x128xf32>
    %36 = arith.mulf %31, %35 : vector<128x128xf32>
    %37 = arith.addf %36, %15 : vector<128x128xf32>
    %c2_i32 = arith.constant 2 : i32
    %38 = arith.cmpi slt, %arg0, %c2_i32 : i32
    %39 = arith.extui %38 : i1 to i32
    %c0_i32_16 = arith.constant 0 : i32
    %40 = arith.cmpi ne, %39, %c0_i32_16 : i32
    scf.if %40 {
      %c0_19 = arith.constant 0 : index
      %c0_20 = arith.constant 0 : index
      %c0_21 = arith.constant 0 : index
      %44 = vector.load %arg6[%c0_19, %c0_20, %c0_21] : memref<1x1x128xf32, #tpu.memory_space<vmem>>, vector<1x1x128xf32>
      %45 = vector.shape_cast %44 : vector<1x1x128xf32> to vector<1x128xf32>
      %46 = vector.broadcast %45 : vector<1x128xf32> to vector<128x128xf32>
      %47 = arith.mulf %37, %46 : vector<128x128xf32>
      %c0_22 = arith.constant 0 : index
      %c0_23 = arith.constant 0 : index
      %c0_24 = arith.constant 0 : index
      %48 = vector.load %arg7[%c0_22, %c0_23, %c0_24] : memref<1x1x128xf32, #tpu.memory_space<vmem>>, vector<1x1x128xf32>
      %49 = vector.shape_cast %48 : vector<1x1x128xf32> to vector<1x128xf32>
      %50 = vector.broadcast %49 : vector<1x128xf32> to vector<128x128xf32>
      %51 = arith.addf %47, %50 : vector<128x128xf32>
      %cst_25 = arith.constant 0.000000e+00 : f32
      %52 = vector.broadcast %cst_25 : f32 to vector<128x128xf32>
      %53 = arith.maximumf %51, %52 : vector<128x128xf32>
      %c0_26 = arith.constant 0 : index
      %c0_27 = arith.constant 0 : index
      %54 = vector.load %arg9[%c0_26, %c0_27] : memref<128x128xf32, #tpu.memory_space<vmem>>, vector<128x128xf32>
      tpu.vector_store %arg9[%c0_26, %c0_27], %53 {strides = array<i32>} : memref<128x128xf32, #tpu.memory_space<vmem>>, vector<128x128xf32>,
    } else {
    }
    %c2_i32_17 = arith.constant 2 : i32
    %41 = arith.cmpi eq, %arg0, %c2_i32_17 : i32
    %42 = arith.extui %41 : i1 to i32
    %c0_i32_18 = arith.constant 0 : i32
    %43 = arith.cmpi ne, %42, %c0_i32_18 : i32
    scf.if %43 {
      %c0_19 = arith.constant 0 : index
      %c0_20 = arith.constant 0 : index
      %44 = vector.load %arg8[%c0_19, %c0_20] : memref<128x128xf32, #tpu.memory_space<vmem>>, vector<128x128xf32>
      tpu.vector_store %arg8[%c0_19, %c0_20], %37 {strides = array<i32>} : memref<128x128xf32, #tpu.memory_space<vmem>>, vector<128x128xf32>,
    } else {
    }
    return
  }
  func.func @transform_0(%arg0: i32) -> (i32, i32) {
    %c0_i32 = arith.constant 0 : i32
    %c0_i32_0 = arith.constant 0 : i32
    %c0_i32_1 = arith.constant 0 : i32
    return %c0_i32, %c0_i32_0 : i32, i32
  }
  func.func @transform_1(%arg0: i32) -> (i32, i32) {
    %c0_i32 = arith.constant 0 : i32
    %c0_i32_0 = arith.constant 0 : i32
    %c0_i32_1 = arith.constant 0 : i32
    return %c0_i32, %c0_i32_0 : i32, i32
  }
  func.func @transform_2(%arg0: i32) -> (i32, i32) {
    %c0_i32 = arith.constant 0 : i32
    %c0_i32_0 = arith.constant 0 : i32
    %c0_i32_1 = arith.constant 0 : i32
    return %c0_i32, %c0_i32_0 : i32, i32
  }
  func.func @transform_3(%arg0: i32) -> (i32, i32, i32) {
    %c0_i32 = arith.constant 0 : i32
    %c0_i32_0 = arith.constant 0 : i32
    %c0_i32_1 = arith.constant 0 : i32
    return %arg0, %c0_i32, %c0_i32_0 : i32, i32, i32
  }
  func.func @transform_4(%arg0: i32) -> (i32, i32, i32) {
    %c0_i32 = arith.constant 0 : i32
    %c0_i32_0 = arith.constant 0 : i32
    %c0_i32_1 = arith.constant 0 : i32
    return %arg0, %c0_i32, %c0_i32_0 : i32, i32, i32
  }
  func.func @transform_5(%arg0: i32) -> (i32, i32, i32) {
    %c0_i32 = arith.constant 0 : i32
    %c0_i32_0 = arith.constant 0 : i32
    %c0_i32_1 = arith.constant 0 : i32
    return %arg0, %c0_i32, %c0_i32_0 : i32, i32, i32
  }
  func.func @transform_6(%arg0: i32) -> (i32, i32, i32) {
    %c0_i32 = arith.constant 0 : i32
    %c0_i32_0 = arith.constant 0 : i32
    %c0_i32_1 = arith.constant 0 : i32
    return %arg0, %c0_i32, %c0_i32_0 : i32, i32, i32
  }
  func.func @transform_7(%arg0: i32) -> (i32, i32) {
    %c0_i32 = arith.constant 0 : i32
    %c0_i32_0 = arith.constant 0 : i32
    %c0_i32_1 = arith.constant 0 : i32
    return %c0_i32, %c0_i32_0 : i32, i32
  }
}

</mosaic_0001>

<llo_original>
// kernel: _graphormer_apply.1
$region0: #{_graphormer_apply.1}
  #allocation0 [shape = 'u32[]', space=smem, size = 0x4, offset = 0x4, fixed_abs, tag = 'smem constant byte address 0x4 - core index']
  #allocation1 [shape = 'u32[72,128]{1,0:T(1,128)}', space=vmem, size = 0x9000, scoped, tag = 'internal scratch']
  #allocation2 [shape = 'f32[128,128]{1,0:T(8,128)}', space=vmem, size = 0x10000, scoped, tag = 'scratch operand']
  %s0 = inlined_call_operand.vmem [shape: f32[128,128], index: 0, kind: input, shape index: {}]
  %s1 = inlined_call_operand.vmem [shape: bf16[128,128], index: 1, kind: input, shape index: {}]
  %s2 = inlined_call_operand.vmem [shape: f32[128,1], index: 2, kind: input, shape index: {}]
  %s3 = inlined_call_operand.hbm [shape: bf16[3,128,512], index: 3, kind: input, shape index: {}]
  %s4 = inlined_call_operand.vmem [shape: f32[3,1,512], index: 4, kind: input, shape index: {}]
  %s5 = inlined_call_operand.vmem [shape: f32[3,1,128], index: 5, kind: input, shape index: {}]
  %s6 = inlined_call_operand.vmem [shape: f32[3,1,128], index: 6, kind: input, shape index: {}]
  %s7 = inlined_call_operand.hbm [shape: f32[128,128], index: 7, kind: output, shape index: {}]
  %s8 = sld [smem:[#allocation0]]
  $region77: #{_graphormer_apply.1} parent=0
    _
  %s10 = ssub.s32 1, %s8
  %s11 = scalar_select 0, %s10, %s8
  $region1: #{_graphormer_apply.1} parent=0
    #allocation3 [shape = 'u8[262144]{0}', space=vmem, size = 0x40000, scoped, tag = 'input window, operand 3']
    #allocation4 [shape = 's32[2]{0}', space=sflag, size = 0x8, scoped, tag = 'scoped memory for _graphormer_apply.1']
    #allocation5 [shape = 's32[2]{0}', space=sflag, size = 0x8, scoped, tag = 'scoped memory for _graphormer_apply.1']
    #allocation6 [shape = 'u8[65536]{0}', space=vmem, size = 0x10000, scoped, tag = 'output window, operand 0, single buffered']
    %12 = vsyncpa [#allocation4], 0
    %s13 = scalar_lea.sflag [#allocation4], 1
    %14 = vsyncpa %s13, 0
    %15 = vsyncpa [#allocation5], 0
    loop: start=0, step=1, limit=5
    $region2: #{_graphormer_apply.1} parent=1 // loop_pre_header
      _
    $region3: #{_graphormer_apply.1} parent=1 // loop_header
      %s17 = sphi 0, %s21
      %p18 = scmp.ge.s32.totalorder %s17, 5
      %s25 = sphi 0, %s25
      %s27 = sphi 0, %s25
      %s28 = sphi 0, %s27
      %s42 = sphi 0, %s28
      %s46 = sphi 0, %s46
      %s48 = sphi 0, %s46
      %s49 = sphi 0, %s48
      %s63 = sphi 0, %s49
      %s67 = sphi 0, %s67
      %s69 = sphi 0, %s67
      %s70 = sphi 0, %s69
      %s84 = sphi 0, %s70
      %s90 = sphi 0, %s92
      %s93 = sphi 0, %s90
      %s94 = sphi 0, %s93
      %s110 = sphi 0, %s94
      %s116 = sphi 0, %s118
      %s119 = sphi 0, %s116
      %s120 = sphi 0, %s119
      %s136 = sphi 0, %s120
      %s142 = sphi 0, %s144
      %s145 = sphi 0, %s142
      %s146 = sphi 0, %s145
      %s162 = sphi 0, %s146
      %s168 = sphi 0, %s170
      %s171 = sphi 0, %s168
      %s172 = sphi 0, %s171
      %s188 = sphi 0, %s172
      %s192 = sphi 0, %s192
      %s194 = sphi 0, %s192
      %s195 = sphi 0, %s194
      %s209 = sphi 0, %s195
    $region4: #{_graphormer_apply.1} parent=1 // loop_header_branch
      %20 = sbr.rel (%p18) target = $region8
    $region5: #{_graphormer_apply.1} parent=1 // loop_body
      %s22 = ssub.s32 %s17, 1
      %s23 = ssub.s32 %s17, 2
      %s24 = sadd.s32 %s17, 1
      %s26 = sadd.s32 %s25, 1
      %p29 = scmp.eq.s32.totalorder %s17, 2
      %p30 = scmp.ne.s32.totalorder %s25, %s27
      %p31 = scmp.eq.s32.totalorder %s17, 0
      %p32 = por %p30, %p31
      %p33 = scmp.ne.s32.totalorder %s25, %s27
      %p34 = scmp.eq.s32.totalorder %s22, 2
      %p35 = por %p33, %p34
      %p36 = scmp.ne.s32.totalorder %s27, %s28
      %p37 = scmp.eq.s32.totalorder %s22, 0
      %p38 = por %p36, %p37
      %p39 = scmp.ne.s32.totalorder %s27, %s28
      %p40 = scmp.eq.s32.totalorder %s23, 2
      %p41 = por %p39, %p40
      %p43 = scmp.ne.s32.totalorder %s28, %s42
      %p44 = scmp.eq.s32.totalorder %s23, 0
      %p45 = por %p43, %p44
      %s47 = sadd.s32 %s46, 1
      %p50 = scmp.eq.s32.totalorder %s17, 2
      %p51 = scmp.ne.s32.totalorder %s46, %s48
      %p52 = scmp.eq.s32.totalorder %s17, 0
      %p53 = por %p51, %p52
      %p54 = scmp.ne.s32.totalorder %s46, %s48
      %p55 = scmp.eq.s32.totalorder %s22, 2
      %p56 = por %p54, %p55
      %p57 = scmp.ne.s32.totalorder %s48, %s49
      %p58 = scmp.eq.s32.totalorder %s22, 0
      %p59 = por %p57, %p58
      %p60 = scmp.ne.s32.totalorder %s48, %s49
      %p61 = scmp.eq.s32.totalorder %s23, 2
      %p62 = por %p60, %p61
      %p64 = scmp.ne.s32.totalorder %s49, %s63
      %p65 = scmp.eq.s32.totalorder %s23, 0
      %p66 = por %p64, %p65
      %s68 = sadd.s32 %s67, 1
      %p71 = scmp.eq.s32.totalorder %s17, 2
      %p72 = scmp.ne.s32.totalorder %s67, %s69
      %p73 = scmp.eq.s32.totalorder %s17, 0
      %p74 = por %p72, %p73
      %p75 = scmp.ne.s32.totalorder %s67, %s69
      %p76 = scmp.eq.s32.totalorder %s22, 2
      %p77 = por %p75, %p76
      %p78 = scmp.ne.s32.totalorder %s69, %s70
      %p79 = scmp.eq.s32.totalorder %s22, 0
      %p80 = por %p78, %p79
      %p81 = scmp.ne.s32.totalorder %s69, %s70
      %p82 = scmp.eq.s32.totalorder %s23, 2
      %p83 = por %p81, %p82
      %p85 = scmp.ne.s32.totalorder %s70, %s84
      %p86 = scmp.eq.s32.totalorder %s23, 0
      %p87 = por %p85, %p86
      %s88 = ssub.s32 %s17, %s24
      %p89 = scmp.eq.s32.totalorder %s88, 0
      %s91 = sadd.s32 %s90, 1
      %s92 = scalar_select %p89, %s90, %s91
      %p95 = pneg %p89
      %p96 = scmp.eq.s32.totalorder %s17, 2
      %p97 = por %p95, %p96
      %p98 = scmp.ne.s32.totalorder %s90, %s93
      %p99 = scmp.eq.s32.totalorder %s17, 0
      %p100 = por %p98, %p99
      %p101 = scmp.ne.s32.totalorder %s90, %s93
      %p102 = scmp.eq.s32.totalorder %s22, 2
      %p103 = por %p101, %p102
      %p104 = scmp.ne.s32.totalorder %s93, %s94
      %p105 = scmp.eq.s32.totalorder %s22, 0
      %p106 = por %p104, %p105
      %p107 = scmp.ne.s32.totalorder %s93, %s94
      %p108 = scmp.eq.s32.totalorder %s23, 2
      %p109 = por %p107, %p108
      %p111 = scmp.ne.s32.totalorder %s94, %s110
      %p112 = scmp.eq.s32.totalorder %s23, 0
      %p113 = por %p111, %p112
      %s114 = ssub.s32 %s17, %s24
      %p115 = scmp.eq.s32.totalorder %s114, 0
      %s117 = sadd.s32 %s116, 1
      %s118 = scalar_select %p115, %s116, %s117
      %p121 = pneg %p115
      %p122 = scmp.eq.s32.totalorder %s17, 2
      %p123 = por %p121, %p122
      %p124 = scmp.ne.s32.totalorder %s116, %s119
      %p125 = scmp.eq.s32.totalorder %s17, 0
      %p126 = por %p124, %p125
      %p127 = scmp.ne.s32.totalorder %s116, %s119
      %p128 = scmp.eq.s32.totalorder %s22, 2
      %p129 = por %p127, %p128
      %p130 = scmp.ne.s32.totalorder %s119, %s120
      %p131 = scmp.eq.s32.totalorder %s22, 0
      %p132 = por %p130, %p131
      %p133 = scmp.ne.s32.totalorder %s119, %s120
      %p134 = scmp.eq.s32.totalorder %s23, 2
      %p135 = por %p133, %p134
      %p137 = scmp.ne.s32.totalorder %s120, %s136
      %p138 = scmp.eq.s32.totalorder %s23, 0
      %p139 = por %p137, %p138
      %s140 = ssub.s32 %s17, %s24
      %p141 = scmp.eq.s32.totalorder %s140, 0
      %s143 = sadd.s32 %s142, 1
      %s144 = scalar_select %p141, %s142, %s143
      %p147 = pneg %p141
      %p148 = scmp.eq.s32.totalorder %s17, 2
      %p149 = por %p147, %p148
      %p150 = scmp.ne.s32.totalorder %s142, %s145
      %p151 = scmp.eq.s32.totalorder %s17, 0
      %p152 = por %p150, %p151
      %p153 = scmp.ne.s32.totalorder %s142, %s145
      %p154 = scmp.eq.s32.totalorder %s22, 2
      %p155 = por %p153, %p154
      %p156 = scmp.ne.s32.totalorder %s145, %s146
      %p157 = scmp.eq.s32.totalorder %s22, 0
      %p158 = por %p156, %p157
      %p159 = scmp.ne.s32.totalorder %s145, %s146
      %p160 = scmp.eq.s32.totalorder %s23, 2
      %p161 = por %p159, %p160
      %p163 = scmp.ne.s32.totalorder %s146, %s162
      %p164 = scmp.eq.s32.totalorder %s23, 0
      %p165 = por %p163, %p164
      %s166 = ssub.s32 %s17, %s24
      %p167 = scmp.eq.s32.totalorder %s166, 0
      %s169 = sadd.s32 %s168, 1
      %s170 = scalar_select %p167, %s168, %s169
      %p173 = pneg %p167
      %p174 = scmp.eq.s32.totalorder %s17, 2
      %p175 = por %p173, %p174
      %p176 = scmp.ne.s32.totalorder %s168, %s171
      %p177 = scmp.eq.s32.totalorder %s17, 0
      %p178 = por %p176, %p177
      %p179 = scmp.ne.s32.totalorder %s168, %s171
      %p180 = scmp.eq.s32.totalorder %s22, 2
      %p181 = por %p179, %p180
      %p182 = scmp.ne.s32.totalorder %s171, %s172
      %p183 = scmp.eq.s32.totalorder %s22, 0
      %p184 = por %p182, %p183
      %p185 = scmp.ne.s32.totalorder %s171, %s172
      %p186 = scmp.eq.s32.totalorder %s23, 2
      %p187 = por %p185, %p186
      %p189 = scmp.ne.s32.totalorder %s172, %s188
      %p190 = scmp.eq.s32.totalorder %s23, 0
      %p191 = por %p189, %p190
      %s193 = sadd.s32 %s192, 1
      %p196 = scmp.eq.s32.totalorder %s17, 2
      %p197 = scmp.ne.s32.totalorder %s192, %s194
      %p198 = scmp.eq.s32.totalorder %s17, 0
      %p199 = por %p197, %p198
      %p200 = scmp.ne.s32.totalorder %s192, %s194
      %p201 = scmp.eq.s32.totalorder %s22, 2
      %p202 = por %p200, %p201
      %p203 = scmp.ne.s32.totalorder %s194, %s195
      %p204 = scmp.eq.s32.totalorder %s22, 0
      %p205 = por %p203, %p204
      %p206 = scmp.ne.s32.totalorder %s194, %s195
      %p207 = scmp.eq.s32.totalorder %s23, 2
      %p208 = por %p206, %p207
      %p210 = scmp.ne.s32.totalorder %s195, %s209
      %p211 = scmp.eq.s32.totalorder %s23, 0
      %p212 = por %p210, %p211
      %p213 = scmp.le.s32.totalorder 1, %s17
      %p214 = scmp.lt.s32.totalorder %s17, 4
      %p215 = pnand %p213, %p214
      %p216 = pneg %p215
      // Predicated region
      $region9: #{_graphormer_apply.1} parent=5 // pred_check
        _
      $region10: #{_graphormer_apply.1} parent=5 // pred_check_branch
        %218 = sbr.rel (%p215) target = $region12
      $region11: #{_graphormer_apply.1} parent=5 // pred_region
        %s219 = ssub.s32 %s17, 1
        // Predicated region
        $region13: #{_graphormer_apply.1} parent=11 // pred_check
          %p220 = pneg %p38
        $region14: #{_graphormer_apply.1} parent=11 // pred_check_branch
          %222 = sbr.rel (%p220) target = $region16
        $region15: #{_graphormer_apply.1} parent=11 // pred_region
          _
        $region16: #{_graphormer_apply.1} parent=11 // pred_fallthru
          _
        // Predicated region
        $region17: #{_graphormer_apply.1} parent=11 // pred_check
          %p223 = pneg %p59
        $region18: #{_graphormer_apply.1} parent=11 // pred_check_branch
          %225 = sbr.rel (%p223) target = $region20
        $region19: #{_graphormer_apply.1} parent=11 // pred_region
          _
        $region20: #{_graphormer_apply.1} parent=11 // pred_fallthru
          _
        // Predicated region
        $region21: #{_graphormer_apply.1} parent=11 // pred_check
          %p226 = pneg %p80
        $region22: #{_graphormer_apply.1} parent=11 // pred_check_branch
          %228 = sbr.rel (%p226) target = $region24
        $region23: #{_graphormer_apply.1} parent=11 // pred_region
          _
        $region24: #{_graphormer_apply.1} parent=11 // pred_fallthru
          _
      $region12: #{_graphormer_apply.1} parent=5 // pred_fallthru
        _
      %p229 = scmp.lt.s32.totalorder %s17, 3
      // Predicated region
      $region25: #{_graphormer_apply.1} parent=5 // pred_check
        %p230 = pneg %p229
      $region26: #{_graphormer_apply.1} parent=5 // pred_check_branch
        %232 = sbr.rel (%p230) target = $region28
      $region27: #{_graphormer_apply.1} parent=5 // pred_region
        // Predicated region
        $region29: #{_graphormer_apply.1} parent=27 // pred_check
          %p233 = pneg %p100
        $region30: #{_graphormer_apply.1} parent=27 // pred_check_branch
          %235 = sbr.rel (%p233) target = $region32
        $region31: #{_graphormer_apply.1} parent=27 // pred_region
          %s236 = sand.u32 %s90, 1
          %s237 = scalar_lea.sflag [#allocation4], %s236
          %s238 = sand.u32 %s90, 1
          %s239 = smul.addr %s238, 256
          %s240 = scalar_lea.vmem [#allocation3], %s239
          %242 = vsyncadd %s237, 0
          %s243 = smul.addr %s17, 64
          %s244 = smul.addr %s243, 4
          %s245 = scalar_lea.hbm %s3, %s244
          %s246 = sshll.u32 %s245, 4
          %s247 = int_to_ptr.hbm [resolvable:$true] %s246
          %s248 = sshll.u32 %s240, 4
          %s249 = int_to_ptr.vmem [resolvable:$true] %s248
          %254 = dma.hbm_to_vmem [thread:$0]  %s247, 4096, %s249, %s237, 256, 256, 16
        $region32: #{_graphormer_apply.1} parent=27 // pred_fallthru
          _
        // Predicated region
        $region33: #{_graphormer_apply.1} parent=27 // pred_check
          %p255 = pneg %p126
        $region34: #{_graphormer_apply.1} parent=27 // pred_check_branch
          %257 = sbr.rel (%p255) target = $region36
        $region35: #{_graphormer_apply.1} parent=27 // pred_region
          %p258 = scmp.lt.s32.totalorder %s17, 2
          %s259 = scalar_select %p258, %s17, 2
          %s260 = smul.addr %s259, 4
          %s261 = scalar_lea.vmem %s4, %s260
        $region36: #{_graphormer_apply.1} parent=27 // pred_fallthru
          _
        // Predicated region
        $region37: #{_graphormer_apply.1} parent=27 // pred_check
          %p262 = pneg %p152
        $region38: #{_graphormer_apply.1} parent=27 // pred_check_branch
          %264 = sbr.rel (%p262) target = $region40
        $region39: #{_graphormer_apply.1} parent=27 // pred_region
          %p265 = scmp.lt.s32.totalorder %s17, 2
          %s266 = scalar_select %p265, %s17, 2
          %s267 = scalar_lea.vmem %s5, %s266
        $region40: #{_graphormer_apply.1} parent=27 // pred_fallthru
          _
        // Predicated region
        $region41: #{_graphormer_apply.1} parent=27 // pred_check
          %p268 = pneg %p178
        $region42: #{_graphormer_apply.1} parent=27 // pred_check_branch
          %270 = sbr.rel (%p268) target = $region44
        $region43: #{_graphormer_apply.1} parent=27 // pred_region
          %p271 = scmp.lt.s32.totalorder %s17, 2
          %s272 = scalar_select %p271, %s17, 2
          %s273 = scalar_lea.vmem %s6, %s272
        $region44: #{_graphormer_apply.1} parent=27 // pred_fallthru
          _
      $region28: #{_graphormer_apply.1} parent=5 // pred_fallthru
        _
      %p274 = scmp.le.s32.totalorder 1, %s17
      %p275 = scmp.lt.s32.totalorder %s17, 4
      %p276 = pnand %p274, %p275
      %p277 = pneg %p276
      // Predicated region
      $region45: #{_graphormer_apply.1} parent=5 // pred_check
        _
      $region46: #{_graphormer_apply.1} parent=5 // pred_check_branch
        %279 = sbr.rel (%p276) target = $region48
      $region47: #{_graphormer_apply.1} parent=5 // pred_region
        %s280 = ssub.s32 %s17, 1
        %s281 = sand.u32 %s93, 1
        %s282 = scalar_lea.sflag [#allocation4], %s281
        %s283 = sand.u32 %s93, 1
        %s284 = smul.addr %s283, 256
        %s285 = scalar_lea.vmem [#allocation3], %s284
        // Predicated region
        $region49: #{_graphormer_apply.1} parent=47 // pred_check
          %p286 = pneg %p106
        $region50: #{_graphormer_apply.1} parent=47 // pred_check_branch
          %288 = sbr.rel (%p286) target = $region52
        $region51: #{_graphormer_apply.1} parent=47 // pred_region
          %290 = dma.done %s282, 4096
        $region52: #{_graphormer_apply.1} parent=47 // pred_fallthru
          _
        %p291 = pneg %p38
        %p292 = pneg %p35
        %p293 = pneg %p59
        %p294 = pneg %p56
        %p295 = pneg %p80
        %p296 = pneg %p77
        %s297 = sand.u32 %s93, 1
        %s298 = scalar_lea.sflag [#allocation4], %s297
        %s299 = sand.u32 %s93, 1
        %s300 = smul.addr %s299, 256
        %s301 = scalar_lea.vmem [#allocation3], %s300
        %p302 = pneg %p106
        %p303 = pneg %p103
        %p304 = scmp.lt.s32.totalorder %s22, 2
        %s305 = scalar_select %p304, %s22, 2
        %s306 = smul.addr %s305, 4
        %s307 = scalar_lea.vmem %s4, %s306
        %p308 = pneg %p132
        %p309 = pneg %p129
        %p310 = scmp.lt.s32.totalorder %s22, 2
        %s311 = scalar_select %p310, %s22, 2
        %s312 = scalar_lea.vmem %s5, %s311
        %p313 = pneg %p158
        %p314 = pneg %p155
        %p315 = scmp.lt.s32.totalorder %s22, 2
        %s316 = scalar_select %p315, %s22, 2
        %s317 = scalar_lea.vmem %s6, %s316
        %p318 = pneg %p184
        %p319 = pneg %p181
        %p320 = pneg %p205
        %p321 = pneg %p202
        %p322 = scmp.lt.s32.totalorder %s22, 2
        %s323 = scalar_select %p322, %s22, 2
        %s324 = smul.addr %s323, 4
        %s325 = scalar_lea.vmem %s4, %s324
        %p326 = scmp.lt.s32.totalorder %s22, 2
        %s327 = scalar_select %p326, %s22, 2
        %s328 = scalar_lea.vmem %s5, %s327
        %p329 = scmp.lt.s32.totalorder %s22, 2
        %s330 = scalar_select %p329, %s22, 2
        %s331 = scalar_lea.vmem %s6, %s330
        %p332 = scmp.eq.s32.totalorder %s22, 0
        // Predicated region
        $region53: #{_graphormer_apply.1} parent=47 // pred_check
          %p333 = pneg %p332
        $region54: #{_graphormer_apply.1} parent=47 // pred_check_branch
          %335 = sbr.rel (%p333) target = $region56
        $region55: #{_graphormer_apply.1} parent=47 // pred_region
          %v336 = vld [vmem:[%s0] sm:$0xff]
          %v337 = vld [vmem:[%s0 + $0x8] sm:$0xff]
          %v338 = vld [vmem:[%s0 + $0x10] sm:$0xff]
          %v339 = vld [vmem:[%s0 + $0x18] sm:$0xff]
          %v340 = vld [vmem:[%s0 + $0x20] sm:$0xff]
          %v341 = vld [vmem:[%s0 + $0x28] sm:$0xff]
          %v342 = vld [vmem:[%s0 + $0x30] sm:$0xff]
          %v343 = vld [vmem:[%s0 + $0x38] sm:$0xff]
          %v344 = vld [vmem:[%s0 + $0x40] sm:$0xff]
          %v345 = vld [vmem:[%s0 + $0x48] sm:$0xff]
          %v346 = vld [vmem:[%s0 + $0x50] sm:$0xff]
          %v347 = vld [vmem:[%s0 + $0x58] sm:$0xff]
          %v348 = vld [vmem:[%s0 + $0x60] sm:$0xff]
          %v349 = vld [vmem:[%s0 + $0x68] sm:$0xff]
          %v350 = vld [vmem:[%s0 + $0x70] sm:$0xff]
          %v351 = vld [vmem:[%s0 + $0x78] sm:$0xff]
          %352 = vst [vmem:[#allocation2] sm:$0xff] %v336
          %353 = vst [vmem:[#allocation2 + $0x8] sm:$0xff] %v337
          %354 = vst [vmem:[#allocation2 + $0x10] sm:$0xff] %v338
          %355 = vst [vmem:[#allocation2 + $0x18] sm:$0xff] %v339
          %356 = vst [vmem:[#allocation2 + $0x20] sm:$0xff] %v340
          %357 = vst [vmem:[#allocation2 + $0x28] sm:$0xff] %v341
          %358 = vst [vmem:[#allocation2 + $0x30] sm:$0xff] %v342
          %359 = vst [vmem:[#allocation2 + $0x38] sm:$0xff] %v343
          %360 = vst [vmem:[#allocation2 + $0x40] sm:$0xff] %v344
          %361 = vst [vmem:[#allocation2 + $0x48] sm:$0xff] %v345
          %362 = vst [vmem:[#allocation2 + $0x50] sm:$0xff] %v346
          %363 = vst [vmem:[#allocation2 + $0x58] sm:$0xff] %v347
          %364 = vst [vmem:[#allocation2 + $0x60] sm:$0xff] %v348
          %365 = vst [vmem:[#allocation2 + $0x68] sm:$0xff] %v349
          %366 = vst [vmem:[#allocation2 + $0x70] sm:$0xff] %v350
          %367 = vst [vmem:[#allocation2 + $0x78] sm:$0xff] %v351
        $region56: #{_graphormer_apply.1} parent=47 // pred_fallthru
          _
        %v368 = vld [vmem:[#allocation2] sm:$0xff]
        %v369 = vld [vmem:[#allocation2 + $0x8] sm:$0xff]
        %v370 = vld [vmem:[#allocation2 + $0x10] sm:$0xff]
        %v371 = vld [vmem:[#allocation2 + $0x18] sm:$0xff]
        %v372 = vld [vmem:[#allocation2 + $0x20] sm:$0xff]
        %v373 = vld [vmem:[#allocation2 + $0x28] sm:$0xff]
        %v374 = vld [vmem:[#allocation2 + $0x30] sm:$0xff]
        %v375 = vld [vmem:[#allocation2 + $0x38] sm:$0xff]
        %v376 = vld [vmem:[#allocation2 + $0x40] sm:$0xff]
        %v377 = vld [vmem:[#allocation2 + $0x48] sm:$0xff]
        %v378 = vld [vmem:[#allocation2 + $0x50] sm:$0xff]
        %v379 = vld [vmem:[#allocation2 + $0x58] sm:$0xff]
        %v380 = vld [vmem:[#allocation2 + $0x60] sm:$0xff]
        %v381 = vld [vmem:[#allocation2 + $0x68] sm:$0xff]
        %v382 = vld [vmem:[#allocation2 + $0x70] sm:$0xff]
        %v383 = vld [vmem:[#allocation2 + $0x78] sm:$0xff]
        %v384 = vpack.c.bf16 %v369, %v368
        %v385 = vpack.c.bf16 %v371, %v370
        %v386 = vpack.c.bf16 %v373, %v372
        %v387 = vpack.c.bf16 %v375, %v374
        %v388 = vpack.c.bf16 %v377, %v376
        %v389 = vpack.c.bf16 %v379, %v378
        %v390 = vpack.c.bf16 %v381, %v380
        %v391 = vpack.c.bf16 %v383, %v382
        %v392 = vld [vmem:[%s285] sm:$0xff]
        %v393 = vld [vmem:[%s285 + $0x8] sm:$0xff]
        %v394 = vld [vmem:[%s285 + $0x10] sm:$0xff]
        %v395 = vld [vmem:[%s285 + $0x18] sm:$0xff]
        %v396 = vld [vmem:[%s285 + $0x20] sm:$0xff]
        %v397 = vld [vmem:[%s285 + $0x28] sm:$0xff]
        %v398 = vld [vmem:[%s285 + $0x30] sm:$0xff]
        %v399 = vld [vmem:[%s285 + $0x38] sm:$0xff]
        %v400 = vld [vmem:[%s285 + $0x40] sm:$0xff]
        %v401 = vld [vmem:[%s285 + $0x48] sm:$0xff]
        %v402 = vld [vmem:[%s285 + $0x50] sm:$0xff]
        %v403 = vld [vmem:[%s285 + $0x58] sm:$0xff]
        %v404 = vld [vmem:[%s285 + $0x60] sm:$0xff]
        %v405 = vld [vmem:[%s285 + $0x68] sm:$0xff]
        %v406 = vld [vmem:[%s285 + $0x70] sm:$0xff]
        %v407 = vld [vmem:[%s285 + $0x78] sm:$0xff]
        %v408 = vld [vmem:[%s285 + $0x80] sm:$0xff]
        %v409 = vld [vmem:[%s285 + $0x88] sm:$0xff]
        %v410 = vld [vmem:[%s285 + $0x90] sm:$0xff]
        %v411 = vld [vmem:[%s285 + $0x98] sm:$0xff]
        %v412 = vld [vmem:[%s285 + $0xa0] sm:$0xff]
        %v413 = vld [vmem:[%s285 + $0xa8] sm:$0xff]
        %v414 = vld [vmem:[%s285 + $0xb0] sm:$0xff]
        %v415 = vld [vmem:[%s285 + $0xb8] sm:$0xff]
        %v416 = vld [vmem:[%s285 + $0xc0] sm:$0xff]
        %v417 = vld [vmem:[%s285 + $0xc8] sm:$0xff]
        %v418 = vld [vmem:[%s285 + $0xd0] sm:$0xff]
        %v419 = vld [vmem:[%s285 + $0xd8] sm:$0xff]
        %v420 = vld [vmem:[%s285 + $0xe0] sm:$0xff]
        %v421 = vld [vmem:[%s285 + $0xe8] sm:$0xff]
        %v422 = vld [vmem:[%s285 + $0xf0] sm:$0xff]
        %v423 = vld [vmem:[%s285 + $0xf8] sm:$0xff]
        %v424 = vld [vmem:[%s325] sm:$0xf]
        %v426 = vperm.slane %v424, 0
        %v427 = vperm.slane %v424, 1
        %v428 = vperm.slane %v424, 2
        %v429 = vperm.slane %v424, 3
        %v466 = vunpack.c.l.b16 %v392
        %v467 = vunpack.c.h.b16 %v392
        %v468 = vunpack.c.l.b16 %v393
        %v469 = vunpack.c.h.b16 %v393
        %v470 = vunpack.c.l.b16 %v394
        %v471 = vunpack.c.h.b16 %v394
        %v472 = vunpack.c.l.b16 %v395
        %v473 = vunpack.c.h.b16 %v395
        %v474 = vunpack.c.l.b16 %v396
        %v475 = vunpack.c.h.b16 %v396
        %v476 = vunpack.c.l.b16 %v397
        %v477 = vunpack.c.h.b16 %v397
        %v478 = vunpack.c.l.b16 %v398
        %v479 = vunpack.c.h.b16 %v398
        %v480 = vunpack.c.l.b16 %v399
        %v481 = vunpack.c.h.b16 %v399
        %v482 = vunpack.c.l.b16 %v400
        %v483 = vunpack.c.h.b16 %v400
        %v484 = vunpack.c.l.b16 %v401
        %v485 = vunpack.c.h.b16 %v401
        %v486 = vunpack.c.l.b16 %v402
        %v487 = vunpack.c.h.b16 %v402
        %v488 = vunpack.c.l.b16 %v403
        %v489 = vunpack.c.h.b16 %v403
        %v490 = vunpack.c.l.b16 %v404
        %v491 = vunpack.c.h.b16 %v404
        %v492 = vunpack.c.l.b16 %v405
        %v493 = vunpack.c.h.b16 %v405
        %v494 = vunpack.c.l.b16 %v406
        %v495 = vunpack.c.h.b16 %v406
        %v496 = vunpack.c.l.b16 %v407
        %v497 = vunpack.c.h.b16 %v407
        %v498 = vunpack.c.l.b16 %v408
        %v499 = vunpack.c.h.b16 %v408
        %v500 = vunpack.c.l.b16 %v409
        %v501 = vunpack.c.h.b16 %v409
        %v502 = vunpack.c.l.b16 %v410
        %v503 = vunpack.c.h.b16 %v410
        %v504 = vunpack.c.l.b16 %v411
        %v505 = vunpack.c.h.b16 %v411
        %v506 = vunpack.c.l.b16 %v412
        %v507 = vunpack.c.h.b16 %v412
        %v508 = vunpack.c.l.b16 %v413
        %v509 = vunpack.c.h.b16 %v413
        %v510 = vunpack.c.l.b16 %v414
        %v511 = vunpack.c.h.b16 %v414
        %v512 = vunpack.c.l.b16 %v415
        %v513 = vunpack.c.h.b16 %v415
        %v514 = vunpack.c.l.b16 %v416
        %v515 = vunpack.c.h.b16 %v416
        %v516 = vunpack.c.l.b16 %v417
        %v517 = vunpack.c.h.b16 %v417
        %v518 = vunpack.c.l.b16 %v418
        %v519 = vunpack.c.h.b16 %v418
        %v520 = vunpack.c.l.b16 %v419
        %v521 = vunpack.c.h.b16 %v419
        %v522 = vunpack.c.l.b16 %v420
        %v523 = vunpack.c.h.b16 %v420
        %v524 = vunpack.c.l.b16 %v421
        %v525 = vunpack.c.h.b16 %v421
        %v526 = vunpack.c.l.b16 %v422
        %v527 = vunpack.c.h.b16 %v422
        %v528 = vunpack.c.l.b16 %v423
        %v529 = vunpack.c.h.b16 %v423
        %v530 = vpack.c.b16 %v470, %v466
        %v531 = vpack.c.b16 %v471, %v467
        %v532 = vpack.c.b16 %v472, %v468
        %v533 = vpack.c.b16 %v473, %v469
        %v534 = vpack.c.b16 %v478, %v474
        %v535 = vpack.c.b16 %v479, %v475
        %v536 = vpack.c.b16 %v480, %v476
        %v537 = vpack.c.b16 %v481, %v477
        %v538 = vpack.c.b16 %v486, %v482
        %v539 = vpack.c.b16 %v487, %v483
        %v540 = vpack.c.b16 %v488, %v484
        %v541 = vpack.c.b16 %v489, %v485
        %v542 = vpack.c.b16 %v494, %v490
        %v543 = vpack.c.b16 %v495, %v491
        %v544 = vpack.c.b16 %v496, %v492
        %v545 = vpack.c.b16 %v497, %v493
        %v546 = vpack.c.b16 %v502, %v498
        %v547 = vpack.c.b16 %v503, %v499
        %v548 = vpack.c.b16 %v504, %v500
        %v549 = vpack.c.b16 %v505, %v501
        %v550 = vpack.c.b16 %v510, %v506
        %v551 = vpack.c.b16 %v511, %v507
        %v552 = vpack.c.b16 %v512, %v508
        %v553 = vpack.c.b16 %v513, %v509
        %v554 = vpack.c.b16 %v518, %v514
        %v555 = vpack.c.b16 %v519, %v515
        %v556 = vpack.c.b16 %v520, %v516
        %v557 = vpack.c.b16 %v521, %v517
        %v558 = vpack.c.b16 %v526, %v522
        %v559 = vpack.c.b16 %v527, %v523
        %v560 = vpack.c.b16 %v528, %v524
        %v561 = vpack.c.b16 %v529, %v525
        %594 = vmatpush.bf16.msra.mxu0 %v558
        %595 = vmatpush.bf16.msra.mxu0 %v554
        %596 = vmatpush.bf16.msra.mxu0 %v550
        %597 = vmatpush.bf16.msra.mxu0 %v546
        %598 = vmatpush.bf16.msra.mxu0 %v542
        %599 = vmatpush.bf16.msra.mxu0 %v538
        %600 = vmatpush.bf16.msra.mxu0 %v534
        %601 = vmatpush.bf16.msra.mxu0 %v530
        %602 = vmatmul.bf16.gmra.mxu0 %v384
        %v603 = vpop.f32.mrf.mxu0
        %v604 = vadd.f32 %v426, %v603
        %v605 = vpop.f32.mrf.mxu0
        %v606 = vadd.f32 %v426, %v605
        %607 = vmatmul.bf16.gmra.mxu0 %v385
        %v608 = vpop.f32.mrf.mxu0
        %v609 = vadd.f32 %v426, %v608
        %v610 = vpop.f32.mrf.mxu0
        %v611 = vadd.f32 %v426, %v610
        %612 = vmatmul.bf16.gmra.mxu0 %v386
        %v613 = vpop.f32.mrf.mxu0
        %v614 = vadd.f32 %v426, %v613
        %v615 = vpop.f32.mrf.mxu0
        %v616 = vadd.f32 %v426, %v615
        %617 = vmatmul.bf16.gmra.mxu0 %v387
        %v618 = vpop.f32.mrf.mxu0
        %v619 = vadd.f32 %v426, %v618
        %v620 = vpop.f32.mrf.mxu0
        %v621 = vadd.f32 %v426, %v620
        %622 = vmatmul.bf16.gmra.mxu0 %v388
        %v623 = vpop.f32.mrf.mxu0
        %v624 = vadd.f32 %v426, %v623
        %v625 = vpop.f32.mrf.mxu0
        %v626 = vadd.f32 %v426, %v625
        %627 = vmatmul.bf16.gmra.mxu0 %v389
        %v628 = vpop.f32.mrf.mxu0
        %v629 = vadd.f32 %v426, %v628
        %v630 = vpop.f32.mrf.mxu0
        %v631 = vadd.f32 %v426, %v630
        %632 = vmatmul.bf16.gmra.mxu0 %v390
        %v633 = vpop.f32.mrf.mxu0
        %v634 = vadd.f32 %v426, %v633
        %v635 = vpop.f32.mrf.mxu0
        %v636 = vadd.f32 %v426, %v635
        %637 = vmatmul.bf16.gmra.mxu0 %v391
        %v638 = vpop.f32.mrf.mxu0
        %v639 = vadd.f32 %v426, %v638
        %v640 = vpop.f32.mrf.mxu0
        %v641 = vadd.f32 %v426, %v640
        %642 = vdwg.mxu0
        %643 = vmatpush.bf16.msra.mxu0 %v559
        %644 = vmatpush.bf16.msra.mxu0 %v555
        %645 = vmatpush.bf16.msra.mxu0 %v551
        %646 = vmatpush.bf16.msra.mxu0 %v547
        %647 = vmatpush.bf16.msra.mxu0 %v543
        %648 = vmatpush.bf16.msra.mxu0 %v539
        %649 = vmatpush.bf16.msra.mxu0 %v535
        %650 = vmatpush.bf16.msra.mxu0 %v531
        %651 = vmatmul.bf16.gmra.mxu0 %v384
        %v652 = vpop.f32.mrf.mxu0
        %v653 = vadd.f32 %v427, %v652
        %v654 = vpop.f32.mrf.mxu0
        %v655 = vadd.f32 %v427, %v654
        %656 = vmatmul.bf16.gmra.mxu0 %v385
        %v657 = vpop.f32.mrf.mxu0
        %v658 = vadd.f32 %v427, %v657
        %v659 = vpop.f32.mrf.mxu0
        %v660 = vadd.f32 %v427, %v659
        %661 = vmatmul.bf16.gmra.mxu0 %v386
        %v662 = vpop.f32.mrf.mxu0
        %v663 = vadd.f32 %v427, %v662
        %v664 = vpop.f32.mrf.mxu0
        %v665 = vadd.f32 %v427, %v664
        %666 = vmatmul.bf16.gmra.mxu0 %v387
        %v667 = vpop.f32.mrf.mxu0
        %v668 = vadd.f32 %v427, %v667
        %v669 = vpop.f32.mrf.mxu0
        %v670 = vadd.f32 %v427, %v669
        %671 = vmatmul.bf16.gmra.mxu0 %v388
        %v672 = vpop.f32.mrf.mxu0
        %v673 = vadd.f32 %v427, %v672
        %v674 = vpop.f32.mrf.mxu0
        %v675 = vadd.f32 %v427, %v674
        %676 = vmatmul.bf16.gmra.mxu0 %v389
        %v677 = vpop.f32.mrf.mxu0
        %v678 = vadd.f32 %v427, %v677
        %v679 = vpop.f32.mrf.mxu0
        %v680 = vadd.f32 %v427, %v679
        %681 = vmatmul.bf16.gmra.mxu0 %v390
        %v682 = vpop.f32.mrf.mxu0
        %v683 = vadd.f32 %v427, %v682
        %v684 = vpop.f32.mrf.mxu0
        %v685 = vadd.f32 %v427, %v684
        %686 = vmatmul.bf16.gmra.mxu0 %v391
        %v687 = vpop.f32.mrf.mxu0
        %v688 = vadd.f32 %v427, %v687
        %v689 = vpop.f32.mrf.mxu0
        %v690 = vadd.f32 %v427, %v689
        %691 = vdwg.mxu0
        %692 = vmatpush.bf16.msra.mxu0 %v560
        %693 = vmatpush.bf16.msra.mxu0 %v556
        %694 = vmatpush.bf16.msra.mxu0 %v552
        %695 = vmatpush.bf16.msra.mxu0 %v548
        %696 = vmatpush.bf16.msra.mxu0 %v544
        %697 = vmatpush.bf16.msra.mxu0 %v540
        %698 = vmatpush.bf16.msra.mxu0 %v536
        %699 = vmatpush.bf16.msra.mxu0 %v532
        %700 = vmatmul.bf16.gmra.mxu0 %v384
        %v701 = vpop.f32.mrf.mxu0
        %v702 = vadd.f32 %v428, %v701
        %v703 = vpop.f32.mrf.mxu0
        %v704 = vadd.f32 %v428, %v703
        %705 = vmatmul.bf16.gmra.mxu0 %v385
        %v706 = vpop.f32.mrf.mxu0
        %v707 = vadd.f32 %v428, %v706
        %v708 = vpop.f32.mrf.mxu0
        %v709 = vadd.f32 %v428, %v708
        %710 = vmatmul.bf16.gmra.mxu0 %v386
        %v711 = vpop.f32.mrf.mxu0
        %v712 = vadd.f32 %v428, %v711
        %v713 = vpop.f32.mrf.mxu0
        %v714 = vadd.f32 %v428, %v713
        %715 = vmatmul.bf16.gmra.mxu0 %v387
        %v716 = vpop.f32.mrf.mxu0
        %v717 = vadd.f32 %v428, %v716
        %v718 = vpop.f32.mrf.mxu0
        %v719 = vadd.f32 %v428, %v718
        %720 = vmatmul.bf16.gmra.mxu0 %v388
        %v721 = vpop.f32.mrf.mxu0
        %v722 = vadd.f32 %v428, %v721
        %v723 = vpop.f32.mrf.mxu0
        %v724 = vadd.f32 %v428, %v723
        %725 = vmatmul.bf16.gmra.mxu0 %v389
        %v726 = vpop.f32.mrf.mxu0
        %v727 = vadd.f32 %v428, %v726
        %v728 = vpop.f32.mrf.mxu0
        %v729 = vadd.f32 %v428, %v728
        %730 = vmatmul.bf16.gmra.mxu0 %v390
        %v731 = vpop.f32.mrf.mxu0
        %v732 = vadd.f32 %v428, %v731
        %v733 = vpop.f32.mrf.mxu0
        %v734 = vadd.f32 %v428, %v733
        %735 = vmatmul.bf16.gmra.mxu0 %v391
        %v736 = vpop.f32.mrf.mxu0
        %v737 = vadd.f32 %v428, %v736
        %v738 = vpop.f32.mrf.mxu0
        %v739 = vadd.f32 %v428, %v738
        %740 = vdwg.mxu0
        %741 = vmatpush.bf16.msra.mxu0 %v561
        %742 = vmatpush.bf16.msra.mxu0 %v557
        %743 = vmatpush.bf16.msra.mxu0 %v553
        %744 = vmatpush.bf16.msra.mxu0 %v549
        %745 = vmatpush.bf16.msra.mxu0 %v545
        %746 = vmatpush.bf16.msra.mxu0 %v541
        %747 = vmatpush.bf16.msra.mxu0 %v537
        %748 = vmatpush.bf16.msra.mxu0 %v533
        %749 = vmatmul.bf16.gmra.mxu0 %v384
        %v750 = vpop.f32.mrf.mxu0
        %v751 = vadd.f32 %v429, %v750
        %v752 = vpop.f32.mrf.mxu0
        %v753 = vadd.f32 %v429, %v752
        %754 = vmatmul.bf16.gmra.mxu0 %v385
        %v755 = vpop.f32.mrf.mxu0
        %v756 = vadd.f32 %v429, %v755
        %v757 = vpop.f32.mrf.mxu0
        %v758 = vadd.f32 %v429, %v757
        %759 = vmatmul.bf16.gmra.mxu0 %v386
        %v760 = vpop.f32.mrf.mxu0
        %v761 = vadd.f32 %v429, %v760
        %v762 = vpop.f32.mrf.mxu0
        %v763 = vadd.f32 %v429, %v762
        %764 = vmatmul.bf16.gmra.mxu0 %v387
        %v765 = vpop.f32.mrf.mxu0
        %v766 = vadd.f32 %v429, %v765
        %v767 = vpop.f32.mrf.mxu0
        %v768 = vadd.f32 %v429, %v767
        %769 = vmatmul.bf16.gmra.mxu0 %v388
        %v770 = vpop.f32.mrf.mxu0
        %v771 = vadd.f32 %v429, %v770
        %v772 = vpop.f32.mrf.mxu0
        %v773 = vadd.f32 %v429, %v772
        %774 = vmatmul.bf16.gmra.mxu0 %v389
        %v775 = vpop.f32.mrf.mxu0
        %v776 = vadd.f32 %v429, %v775
        %v777 = vpop.f32.mrf.mxu0
        %v778 = vadd.f32 %v429, %v777
        %779 = vmatmul.bf16.gmra.mxu0 %v390
        %v780 = vpop.f32.mrf.mxu0
        %v781 = vadd.f32 %v429, %v780
        %v782 = vpop.f32.mrf.mxu0
        %v783 = vadd.f32 %v429, %v782
        %784 = vmatmul.bf16.gmra.mxu0 %v391
        %v785 = vpop.f32.mrf.mxu0
        %v786 = vadd.f32 %v429, %v785
        %v787 = vpop.f32.mrf.mxu0
        %v788 = vadd.f32 %v429, %v787
        %789 = vdwg.mxu0
        %v790 = vpack.c.bf16 %v606, %v604
        %v791 = vpack.c.bf16 %v611, %v609
        %v792 = vpack.c.bf16 %v616, %v614
        %v793 = vpack.c.bf16 %v621, %v619
        %v794 = vpack.c.bf16 %v626, %v624
        %v795 = vpack.c.bf16 %v631, %v629
        %v796 = vpack.c.bf16 %v636, %v634
        %v797 = vpack.c.bf16 %v641, %v639
        %v798 = vpack.c.bf16 %v655, %v653
        %v799 = vpack.c.bf16 %v660, %v658
        %v800 = vpack.c.bf16 %v665, %v663
        %v801 = vpack.c.bf16 %v670, %v668
        %v802 = vpack.c.bf16 %v675, %v673
        %v803 = vpack.c.bf16 %v680, %v678
        %v804 = vpack.c.bf16 %v685, %v683
        %v805 = vpack.c.bf16 %v690, %v688
        %v806 = vld [vmem:[%s1] sm:$0xf]
        %v807 = vld [vmem:[%s1 + $0x4] sm:$0xf]
        %v808 = vld [vmem:[%s1 + $0x8] sm:$0xf]
        %v809 = vld [vmem:[%s1 + $0xc] sm:$0xf]
        %v810 = vld [vmem:[%s1 + $0x10] sm:$0xf]
        %v811 = vld [vmem:[%s1 + $0x14] sm:$0xf]
        %v812 = vld [vmem:[%s1 + $0x18] sm:$0xf]
        %v813 = vld [vmem:[%s1 + $0x1c] sm:$0xf]
        %v814 = vld [vmem:[%s1 + $0x20] sm:$0xf]
        %v815 = vld [vmem:[%s1 + $0x24] sm:$0xf]
        %v816 = vld [vmem:[%s1 + $0x28] sm:$0xf]
        %v817 = vld [vmem:[%s1 + $0x2c] sm:$0xf]
        %v818 = vld [vmem:[%s1 + $0x30] sm:$0xf]
        %v819 = vld [vmem:[%s1 + $0x34] sm:$0xf]
        %v820 = vld [vmem:[%s1 + $0x38] sm:$0xf]
        %v821 = vld [vmem:[%s1 + $0x3c] sm:$0xf]
        %v822 = vunpack.c.l.bf16 %v806
        %v823 = vunpack.c.l.bf16 %v807
        %v824 = vunpack.c.l.bf16 %v808
        %v825 = vunpack.c.l.bf16 %v809
        %v826 = vunpack.c.l.bf16 %v810
        %v827 = vunpack.c.l.bf16 %v811
        %v828 = vunpack.c.l.bf16 %v812
        %v829 = vunpack.c.l.bf16 %v813
        %v830 = vunpack.c.l.bf16 %v814
        %v831 = vunpack.c.l.bf16 %v815
        %v832 = vunpack.c.l.bf16 %v816
        %v833 = vunpack.c.l.bf16 %v817
        %v834 = vunpack.c.l.bf16 %v818
        %v835 = vunpack.c.l.bf16 %v819
        %v836 = vunpack.c.l.bf16 %v820
        %v837 = vunpack.c.l.bf16 %v821
        %838 = vmatpush.bf16.xpose.msra.mxu0 %v805
        %839 = vmatpush.bf16.xpose.msra.mxu0 %v804
        %840 = vmatpush.bf16.xpose.msra.mxu0 %v803
        %841 = vmatpush.bf16.xpose.msra.mxu0 %v802
        %842 = vmatpush.bf16.xpose.msra.mxu0 %v801
        %843 = vmatpush.bf16.xpose.msra.mxu0 %v800
        %844 = vmatpush.bf16.xpose.msra.mxu0 %v799
        %845 = vmatpush.bf16.xpose.msra.mxu0 %v798
        %846 = vmatmul.bf16.gmra.mxu0 %v790
        %v847 = vpop.f32.mrf.mxu0
        %v848 = vadd.f32 %v822, %v847
        %v849 = vpop.f32.mrf.mxu0
        %v850 = vadd.f32 %v823, %v849
        %851 = vmatmul.bf16.gmra.mxu0 %v791
        %v852 = vpop.f32.mrf.mxu0
        %v853 = vadd.f32 %v824, %v852
        %v854 = vpop.f32.mrf.mxu0
        %v855 = vadd.f32 %v825, %v854
        %856 = vmatmul.bf16.gmra.mxu0 %v792
        %v857 = vpop.f32.mrf.mxu0
        %v858 = vadd.f32 %v826, %v857
        %v859 = vpop.f32.mrf.mxu0
        %v860 = vadd.f32 %v827, %v859
        %861 = vmatmul.bf16.gmra.mxu0 %v793
        %v862 = vpop.f32.mrf.mxu0
        %v863 = vadd.f32 %v828, %v862
        %v864 = vpop.f32.mrf.mxu0
        %v865 = vadd.f32 %v829, %v864
        %866 = vmatmul.bf16.gmra.mxu0 %v794
        %v867 = vpop.f32.mrf.mxu0
        %v868 = vadd.f32 %v830, %v867
        %v869 = vpop.f32.mrf.mxu0
        %v870 = vadd.f32 %v831, %v869
        %871 = vmatmul.bf16.gmra.mxu0 %v795
        %v872 = vpop.f32.mrf.mxu0
        %v873 = vadd.f32 %v832, %v872
        %v874 = vpop.f32.mrf.mxu0
        %v875 = vadd.f32 %v833, %v874
        %876 = vmatmul.bf16.gmra.mxu0 %v796
        %v877 = vpop.f32.mrf.mxu0
        %v878 = vadd.f32 %v834, %v877
        %v879 = vpop.f32.mrf.mxu0
        %v880 = vadd.f32 %v835, %v879
        %881 = vmatmul.bf16.gmra.mxu0 %v797
        %v882 = vpop.f32.mrf.mxu0
        %v883 = vadd.f32 %v836, %v882
        %v884 = vpop.f32.mrf.mxu0
        %v885 = vadd.f32 %v837, %v884
        %886 = vdwg.mxu0
        %887 = vmax.xlane.f32.xlu0 %v848
        %v888 = vpop.xlane.xlu0 %887
        %889 = vmax.xlane.f32.xlu0 %v850
        %v890 = vpop.xlane.xlu0 %889
        %891 = vmax.xlane.f32.xlu0 %v853
        %v892 = vpop.xlane.xlu0 %891
        %893 = vmax.xlane.f32.xlu0 %v855
        %v894 = vpop.xlane.xlu0 %893
        %895 = vmax.xlane.f32.xlu0 %v858
        %v896 = vpop.xlane.xlu0 %895
        %897 = vmax.xlane.f32.xlu0 %v860
        %v898 = vpop.xlane.xlu0 %897
        %899 = vmax.xlane.f32.xlu0 %v863
        %v900 = vpop.xlane.xlu0 %899
        %901 = vmax.xlane.f32.xlu0 %v865
        %v902 = vpop.xlane.xlu0 %901
        %903 = vmax.xlane.f32.xlu0 %v868
        %v904 = vpop.xlane.xlu0 %903
        %905 = vmax.xlane.f32.xlu0 %v870
        %v906 = vpop.xlane.xlu0 %905
        %907 = vmax.xlane.f32.xlu0 %v873
        %v908 = vpop.xlane.xlu0 %907
        %909 = vmax.xlane.f32.xlu0 %v875
        %v910 = vpop.xlane.xlu0 %909
        %911 = vmax.xlane.f32.xlu0 %v878
        %v912 = vpop.xlane.xlu0 %911
        %913 = vmax.xlane.f32.xlu0 %v880
        %v914 = vpop.xlane.xlu0 %913
        %915 = vmax.xlane.f32.xlu0 %v883
        %v916 = vpop.xlane.xlu0 %915
        %917 = vmax.xlane.f32.xlu0 %v885
        %v918 = vpop.xlane.xlu0 %917
        %v919 = vsub.f32 %v848, %v888
        %v920 = vsub.f32 %v850, %v890
        %v921 = vsub.f32 %v853, %v892
        %v922 = vsub.f32 %v855, %v894
        %v923 = vsub.f32 %v858, %v896
        %v924 = vsub.f32 %v860, %v898
        %v925 = vsub.f32 %v863, %v900
        %v926 = vsub.f32 %v865, %v902
        %v927 = vsub.f32 %v868, %v904
        %v928 = vsub.f32 %v870, %v906
        %v929 = vsub.f32 %v873, %v908
        %v930 = vsub.f32 %v875, %v910
        %v931 = vsub.f32 %v878, %v912
        %v932 = vsub.f32 %v880, %v914
        %v933 = vsub.f32 %v883, %v916
        %v934 = vsub.f32 %v885, %v918
        %v935 = vmul.f32 %v919, 1.442695
        %v936 = vpow.pop %v935
        %v937 = vmul.f32 %v920, 1.442695
        %v938 = vpow.pop %v937
        %v939 = vmul.f32 %v921, 1.442695
        %v940 = vpow.pop %v939
        %v941 = vmul.f32 %v922, 1.442695
        %v942 = vpow.pop %v941
        %v943 = vmul.f32 %v923, 1.442695
        %v944 = vpow.pop %v943
        %v945 = vmul.f32 %v924, 1.442695
        %v946 = vpow.pop %v945
        %v947 = vmul.f32 %v925, 1.442695
        %v948 = vpow.pop %v947
        %v949 = vmul.f32 %v926, 1.442695
        %v950 = vpow.pop %v949
        %v951 = vmul.f32 %v927, 1.442695
        %v952 = vpow.pop %v951
        %v953 = vmul.f32 %v928, 1.442695
        %v954 = vpow.pop %v953
        %v955 = vmul.f32 %v929, 1.442695
        %v956 = vpow.pop %v955
        %v957 = vmul.f32 %v930, 1.442695
        %v958 = vpow.pop %v957
        %v959 = vmul.f32 %v931, 1.442695
        %v960 = vpow.pop %v959
        %v961 = vmul.f32 %v932, 1.442695
        %v962 = vpow.pop %v961
        %v963 = vmul.f32 %v933, 1.442695
        %v964 = vpow.pop %v963
        %v965 = vmul.f32 %v934, 1.442695
        %v966 = vpow.pop %v965
        %967 = vadd.xlane.f32.xlu0 %v936
        %v968 = vpop.xlane.xlu0 %967
        %969 = vadd.xlane.f32.xlu0 %v938
        %v970 = vpop.xlane.xlu0 %969
        %971 = vadd.xlane.f32.xlu0 %v940
        %v972 = vpop.xlane.xlu0 %971
        %973 = vadd.xlane.f32.xlu0 %v942
        %v974 = vpop.xlane.xlu0 %973
        %975 = vadd.xlane.f32.xlu0 %v944
        %v976 = vpop.xlane.xlu0 %975
        %977 = vadd.xlane.f32.xlu0 %v946
        %v978 = vpop.xlane.xlu0 %977
        %979 = vadd.xlane.f32.xlu0 %v948
        %v980 = vpop.xlane.xlu0 %979
        %981 = vadd.xlane.f32.xlu0 %v950
        %v982 = vpop.xlane.xlu0 %981
        %983 = vadd.xlane.f32.xlu0 %v952
        %v984 = vpop.xlane.xlu0 %983
        %985 = vadd.xlane.f32.xlu0 %v954
        %v986 = vpop.xlane.xlu0 %985
        %987 = vadd.xlane.f32.xlu0 %v956
        %v988 = vpop.xlane.xlu0 %987
        %989 = vadd.xlane.f32.xlu0 %v958
        %v990 = vpop.xlane.xlu0 %989
        %991 = vadd.xlane.f32.xlu0 %v960
        %v992 = vpop.xlane.xlu0 %991
        %993 = vadd.xlane.f32.xlu0 %v962
        %v994 = vpop.xlane.xlu0 %993
        %995 = vadd.xlane.f32.xlu0 %v964
        %v996 = vpop.xlane.xlu0 %995
        %997 = vadd.xlane.f32.xlu0 %v966
        %v998 = vpop.xlane.xlu0 %997
        %v999 = vpack.c.bf16 %v938, %v936
        %v1000 = vpack.c.bf16 %v942, %v940
        %v1001 = vpack.c.bf16 %v946, %v944
        %v1002 = vpack.c.bf16 %v950, %v948
        %v1003 = vpack.c.bf16 %v954, %v952
        %v1004 = vpack.c.bf16 %v958, %v956
        %v1005 = vpack.c.bf16 %v962, %v960
        %v1006 = vpack.c.bf16 %v966, %v964
        %v1007 = vpack.c.bf16 %v704, %v702
        %v1008 = vpack.c.bf16 %v709, %v707
        %v1009 = vpack.c.bf16 %v714, %v712
        %v1010 = vpack.c.bf16 %v719, %v717
        %v1011 = vpack.c.bf16 %v724, %v722
        %v1012 = vpack.c.bf16 %v729, %v727
        %v1013 = vpack.c.bf16 %v734, %v732
        %v1014 = vpack.c.bf16 %v739, %v737
        %1015 = vmatpush.bf16.msra.mxu0 %v1014
        %1016 = vmatpush.bf16.msra.mxu0 %v1013
        %1017 = vmatpush.bf16.msra.mxu0 %v1012
        %1018 = vmatpush.bf16.msra.mxu0 %v1011
        %1019 = vmatpush.bf16.msra.mxu0 %v1010
        %1020 = vmatpush.bf16.msra.mxu0 %v1009
        %1021 = vmatpush.bf16.msra.mxu0 %v1008
        %1022 = vmatpush.bf16.msra.mxu0 %v1007
        %1023 = vmatmul.bf16.gmra.mxu0 %v999
        %v1024 = vpop.f32.mrf.mxu0
        %v1025 = vadd.f32 0.0, %v1024
        %v1026 = vpop.f32.mrf.mxu0
        %v1027 = vadd.f32 0.0, %v1026
        %1028 = vmatmul.bf16.gmra.mxu0 %v1000
        %v1029 = vpop.f32.mrf.mxu0
        %v1030 = vadd.f32 0.0, %v1029
        %v1031 = vpop.f32.mrf.mxu0
        %v1032 = vadd.f32 0.0, %v1031
        %1033 = vmatmul.bf16.gmra.mxu0 %v1001
        %v1034 = vpop.f32.mrf.mxu0
        %v1035 = vadd.f32 0.0, %v1034
        %v1036 = vpop.f32.mrf.mxu0
        %v1037 = vadd.f32 0.0, %v1036
        %1038 = vmatmul.bf16.gmra.mxu0 %v1002
        %v1039 = vpop.f32.mrf.mxu0
        %v1040 = vadd.f32 0.0, %v1039
        %v1041 = vpop.f32.mrf.mxu0
        %v1042 = vadd.f32 0.0, %v1041
        %1043 = vmatmul.bf16.gmra.mxu0 %v1003
        %v1044 = vpop.f32.mrf.mxu0
        %v1045 = vadd.f32 0.0, %v1044
        %v1046 = vpop.f32.mrf.mxu0
        %v1047 = vadd.f32 0.0, %v1046
        %1048 = vmatmul.bf16.gmra.mxu0 %v1004
        %v1049 = vpop.f32.mrf.mxu0
        %v1050 = vadd.f32 0.0, %v1049
        %v1051 = vpop.f32.mrf.mxu0
        %v1052 = vadd.f32 0.0, %v1051
        %1053 = vmatmul.bf16.gmra.mxu0 %v1005
        %v1054 = vpop.f32.mrf.mxu0
        %v1055 = vadd.f32 0.0, %v1054
        %v1056 = vpop.f32.mrf.mxu0
        %v1057 = vadd.f32 0.0, %v1056
        %1058 = vmatmul.bf16.gmra.mxu0 %v1006
        %v1059 = vpop.f32.mrf.mxu0
        %v1060 = vadd.f32 0.0, %v1059
        %v1061 = vpop.f32.mrf.mxu0
        %v1062 = vadd.f32 0.0, %v1061
        %1063 = vdwg.mxu0
        %v1064 = vrcp.pop %v968
        %v1065 = vrcp.pop %v970
        %v1066 = vrcp.pop %v972
        %v1067 = vrcp.pop %v974
        %v1068 = vrcp.pop %v976
        %v1069 = vrcp.pop %v978
        %v1070 = vrcp.pop %v980
        %v1071 = vrcp.pop %v982
        %v1072 = vrcp.pop %v984
        %v1073 = vrcp.pop %v986
        %v1074 = vrcp.pop %v988
        %v1075 = vrcp.pop %v990
        %v1076 = vrcp.pop %v992
        %v1077 = vrcp.pop %v994
        %v1078 = vrcp.pop %v996
        %v1079 = vrcp.pop %v998
        %v1080 = vld [vmem:[%s2] sm:$0xff]
        %v1081 = vld [vmem:[%s2 + $0x8] sm:$0xff]
        %v1082 = vld [vmem:[%s2 + $0x10] sm:$0xff]
        %v1083 = vld [vmem:[%s2 + $0x18] sm:$0xff]
        %v1084 = vld [vmem:[%s2 + $0x20] sm:$0xff]
        %v1085 = vld [vmem:[%s2 + $0x28] sm:$0xff]
        %v1086 = vld [vmem:[%s2 + $0x30] sm:$0xff]
        %v1087 = vld [vmem:[%s2 + $0x38] sm:$0xff]
        %v1088 = vld [vmem:[%s2 + $0x40] sm:$0xff]
        %v1089 = vld [vmem:[%s2 + $0x48] sm:$0xff]
        %v1090 = vld [vmem:[%s2 + $0x50] sm:$0xff]
        %v1091 = vld [vmem:[%s2 + $0x58] sm:$0xff]
        %v1092 = vld [vmem:[%s2 + $0x60] sm:$0xff]
        %v1093 = vld [vmem:[%s2 + $0x68] sm:$0xff]
        %v1094 = vld [vmem:[%s2 + $0x70] sm:$0xff]
        %v1095 = vld [vmem:[%s2 + $0x78] sm:$0xff]
        %v1096 = vmul.f32 %v1064, %v1080
        %v1097 = vmul.f32 %v1065, %v1081
        %v1098 = vmul.f32 %v1066, %v1082
        %v1099 = vmul.f32 %v1067, %v1083
        %v1100 = vmul.f32 %v1068, %v1084
        %v1101 = vmul.f32 %v1069, %v1085
        %v1102 = vmul.f32 %v1070, %v1086
        %v1103 = vmul.f32 %v1071, %v1087
        %v1104 = vmul.f32 %v1072, %v1088
        %v1105 = vmul.f32 %v1073, %v1089
        %v1106 = vmul.f32 %v1074, %v1090
        %v1107 = vmul.f32 %v1075, %v1091
        %v1108 = vmul.f32 %v1076, %v1092
        %v1109 = vmul.f32 %v1077, %v1093
        %v1110 = vmul.f32 %v1078, %v1094
        %v1111 = vmul.f32 %v1079, %v1095
        %1113 = vset.pattern.permute.xlu0 0
        %1114 = vperm.xlu0 %1113, %v1096
        %v1115 = vpop.permute.xlu0 %1114
        %1118 = vset.pattern.permute.xlu0 0
        %1119 = vperm.xlu0 %1118, %v1097
        %v1120 = vpop.permute.xlu0 %1119
        %1123 = vset.pattern.permute.xlu0 0
        %1124 = vperm.xlu0 %1123, %v1098
        %v1125 = vpop.permute.xlu0 %1124
        %1128 = vset.pattern.permute.xlu0 0
        %1129 = vperm.xlu0 %1128, %v1099
        %v1130 = vpop.permute.xlu0 %1129
        %1133 = vset.pattern.permute.xlu0 0
        %1134 = vperm.xlu0 %1133, %v1100
        %v1135 = vpop.permute.xlu0 %1134
        %1138 = vset.pattern.permute.xlu0 0
        %1139 = vperm.xlu0 %1138, %v1101
        %v1140 = vpop.permute.xlu0 %1139
        %1143 = vset.pattern.permute.xlu0 0
        %1144 = vperm.xlu0 %1143, %v1102
        %v1145 = vpop.permute.xlu0 %1144
        %1148 = vset.pattern.permute.xlu0 0
        %1149 = vperm.xlu0 %1148, %v1103
        %v1150 = vpop.permute.xlu0 %1149
        %1153 = vset.pattern.permute.xlu0 0
        %1154 = vperm.xlu0 %1153, %v1104
        %v1155 = vpop.permute.xlu0 %1154
        %1158 = vset.pattern.permute.xlu0 0
        %1159 = vperm.xlu0 %1158, %v1105
        %v1160 = vpop.permute.xlu0 %1159
        %1163 = vset.pattern.permute.xlu0 0
        %1164 = vperm.xlu0 %1163, %v1106
        %v1165 = vpop.permute.xlu0 %1164
        %1168 = vset.pattern.permute.xlu0 0
        %1169 = vperm.xlu0 %1168, %v1107
        %v1170 = vpop.permute.xlu0 %1169
        %1173 = vset.pattern.permute.xlu0 0
        %1174 = vperm.xlu0 %1173, %v1108
        %v1175 = vpop.permute.xlu0 %1174
        %1178 = vset.pattern.permute.xlu0 0
        %1179 = vperm.xlu0 %1178, %v1109
        %v1180 = vpop.permute.xlu0 %1179
        %1183 = vset.pattern.permute.xlu0 0
        %1184 = vperm.xlu0 %1183, %v1110
        %v1185 = vpop.permute.xlu0 %1184
        %1188 = vset.pattern.permute.xlu0 0
        %1189 = vperm.xlu0 %1188, %v1111
        %v1190 = vpop.permute.xlu0 %1189
        %v1192 = vmul.f32 %v1025, %v1115
        %v1193 = vmul.f32 %v1027, %v1120
        %v1194 = vmul.f32 %v1030, %v1125
        %v1195 = vmul.f32 %v1032, %v1130
        %v1196 = vmul.f32 %v1035, %v1135
        %v1197 = vmul.f32 %v1037, %v1140
        %v1198 = vmul.f32 %v1040, %v1145
        %v1199 = vmul.f32 %v1042, %v1150
        %v1200 = vmul.f32 %v1045, %v1155
        %v1201 = vmul.f32 %v1047, %v1160
        %v1202 = vmul.f32 %v1050, %v1165
        %v1203 = vmul.f32 %v1052, %v1170
        %v1204 = vmul.f32 %v1055, %v1175
        %v1205 = vmul.f32 %v1057, %v1180
        %v1206 = vmul.f32 %v1060, %v1185
        %v1207 = vmul.f32 %v1062, %v1190
        %v1208 = vadd.f32 %v1192, %v751
        %v1209 = vadd.f32 %v1193, %v753
        %v1210 = vadd.f32 %v1194, %v756
        %v1211 = vadd.f32 %v1195, %v758
        %v1212 = vadd.f32 %v1196, %v761
        %v1213 = vadd.f32 %v1197, %v763
        %v1214 = vadd.f32 %v1198, %v766
        %v1215 = vadd.f32 %v1199, %v768
        %v1216 = vadd.f32 %v1200, %v771
        %v1217 = vadd.f32 %v1201, %v773
        %v1218 = vadd.f32 %v1202, %v776
        %v1219 = vadd.f32 %v1203, %v778
        %v1220 = vadd.f32 %v1204, %v781
        %v1221 = vadd.f32 %v1205, %v783
        %v1222 = vadd.f32 %v1206, %v786
        %v1223 = vadd.f32 %v1207, %v788
        %p1224 = scmp.lt.s32.totalorder %s22, 2
        // Predicated region
        $region57: #{_graphormer_apply.1} parent=47 // pred_check
          %p1225 = pneg %p1224
        $region58: #{_graphormer_apply.1} parent=47 // pred_check_branch
          %1227 = sbr.rel (%p1225) target = $region60
        $region59: #{_graphormer_apply.1} parent=47 // pred_region
          %v1228 = vld [vmem:[%s328] sm:$0x1]
          %v1230 = vperm.slane %v1228, 0
          %v1232 = vmul.f32 %v1208, %v1230
          %v1233 = vmul.f32 %v1209, %v1230
          %v1234 = vmul.f32 %v1210, %v1230
          %v1235 = vmul.f32 %v1211, %v1230
          %v1236 = vmul.f32 %v1212, %v1230
          %v1237 = vmul.f32 %v1213, %v1230
          %v1238 = vmul.f32 %v1214, %v1230
          %v1239 = vmul.f32 %v1215, %v1230
          %v1240 = vmul.f32 %v1216, %v1230
          %v1241 = vmul.f32 %v1217, %v1230
          %v1242 = vmul.f32 %v1218, %v1230
          %v1243 = vmul.f32 %v1219, %v1230
          %v1244 = vmul.f32 %v1220, %v1230
          %v1245 = vmul.f32 %v1221, %v1230
          %v1246 = vmul.f32 %v1222, %v1230
          %v1247 = vmul.f32 %v1223, %v1230
          %v1248 = vld [vmem:[%s331] sm:$0x1]
          %v1250 = vperm.slane %v1248, 0
          %v1252 = vadd.f32 %v1232, %v1250
          %v1253 = vadd.f32 %v1233, %v1250
          %v1254 = vadd.f32 %v1234, %v1250
          %v1255 = vadd.f32 %v1235, %v1250
          %v1256 = vadd.f32 %v1236, %v1250
          %v1257 = vadd.f32 %v1237, %v1250
          %v1258 = vadd.f32 %v1238, %v1250
          %v1259 = vadd.f32 %v1239, %v1250
          %v1260 = vadd.f32 %v1240, %v1250
          %v1261 = vadd.f32 %v1241, %v1250
          %v1262 = vadd.f32 %v1242, %v1250
          %v1263 = vadd.f32 %v1243, %v1250
          %v1264 = vadd.f32 %v1244, %v1250
          %v1265 = vadd.f32 %v1245, %v1250
          %v1266 = vadd.f32 %v1246, %v1250
          %v1267 = vadd.f32 %v1247, %v1250
          %v1268 = vmax.f32 %v1252, 0.0
          %v1269 = vmax.f32 %v1253, 0.0
          %v1270 = vmax.f32 %v1254, 0.0
          %v1271 = vmax.f32 %v1255, 0.0
          %v1272 = vmax.f32 %v1256, 0.0
          %v1273 = vmax.f32 %v1257, 0.0
          %v1274 = vmax.f32 %v1258, 0.0
          %v1275 = vmax.f32 %v1259, 0.0
          %v1276 = vmax.f32 %v1260, 0.0
          %v1277 = vmax.f32 %v1261, 0.0
          %v1278 = vmax.f32 %v1262, 0.0
          %v1279 = vmax.f32 %v1263, 0.0
          %v1280 = vmax.f32 %v1264, 0.0
          %v1281 = vmax.f32 %v1265, 0.0
          %v1282 = vmax.f32 %v1266, 0.0
          %v1283 = vmax.f32 %v1267, 0.0
          %1284 = vst [vmem:[#allocation2] sm:$0xff] %v1268
          %1285 = vst [vmem:[#allocation2 + $0x8] sm:$0xff] %v1269
          %1286 = vst [vmem:[#allocation2 + $0x10] sm:$0xff] %v1270
          %1287 = vst [vmem:[#allocation2 + $0x18] sm:$0xff] %v1271
          %1288 = vst [vmem:[#allocation2 + $0x20] sm:$0xff] %v1272
          %1289 = vst [vmem:[#allocation2 + $0x28] sm:$0xff] %v1273
          %1290 = vst [vmem:[#allocation2 + $0x30] sm:$0xff] %v1274
          %1291 = vst [vmem:[#allocation2 + $0x38] sm:$0xff] %v1275
          %1292 = vst [vmem:[#allocation2 + $0x40] sm:$0xff] %v1276
          %1293 = vst [vmem:[#allocation2 + $0x48] sm:$0xff] %v1277
          %1294 = vst [vmem:[#allocation2 + $0x50] sm:$0xff] %v1278
          %1295 = vst [vmem:[#allocation2 + $0x58] sm:$0xff] %v1279
          %1296 = vst [vmem:[#allocation2 + $0x60] sm:$0xff] %v1280
          %1297 = vst [vmem:[#allocation2 + $0x68] sm:$0xff] %v1281
          %1298 = vst [vmem:[#allocation2 + $0x70] sm:$0xff] %v1282
          %1299 = vst [vmem:[#allocation2 + $0x78] sm:$0xff] %v1283
        $region60: #{_graphormer_apply.1} parent=47 // pred_fallthru
          _
        %p1300 = scmp.eq.s32.totalorder %s22, 2
        // Predicated region
        $region61: #{_graphormer_apply.1} parent=47 // pred_check
          %p1301 = pneg %p1300
        $region62: #{_graphormer_apply.1} parent=47 // pred_check_branch
          %1303 = sbr.rel (%p1301) target = $region64
        $region63: #{_graphormer_apply.1} parent=47 // pred_region
          %1304 = vst [vmem:[#allocation6] sm:$0xff] %v1208
          %1305 = vst [vmem:[#allocation6 + $0x8] sm:$0xff] %v1209
          %1306 = vst [vmem:[#allocation6 + $0x10] sm:$0xff] %v1210
          %1307 = vst [vmem:[#allocation6 + $0x18] sm:$0xff] %v1211
          %1308 = vst [vmem:[#allocation6 + $0x20] sm:$0xff] %v1212
          %1309 = vst [vmem:[#allocation6 + $0x28] sm:$0xff] %v1213
          %1310 = vst [vmem:[#allocation6 + $0x30] sm:$0xff] %v1214
          %1311 = vst [vmem:[#allocation6 + $0x38] sm:$0xff] %v1215
          %1312 = vst [vmem:[#allocation6 + $0x40] sm:$0xff] %v1216
          %1313 = vst [vmem:[#allocation6 + $0x48] sm:$0xff] %v1217
          %1314 = vst [vmem:[#allocation6 + $0x50] sm:$0xff] %v1218
          %1315 = vst [vmem:[#allocation6 + $0x58] sm:$0xff] %v1219
          %1316 = vst [vmem:[#allocation6 + $0x60] sm:$0xff] %v1220
          %1317 = vst [vmem:[#allocation6 + $0x68] sm:$0xff] %v1221
          %1318 = vst [vmem:[#allocation6 + $0x70] sm:$0xff] %v1222
          %1319 = vst [vmem:[#allocation6 + $0x78] sm:$0xff] %v1223
        $region64: #{_graphormer_apply.1} parent=47 // pred_fallthru
          _
        // Predicated region
        $region65: #{_graphormer_apply.1} parent=47 // pred_check
          %p1320 = pneg %p202
        $region66: #{_graphormer_apply.1} parent=47 // pred_check_branch
          %1322 = sbr.rel (%p1320) target = $region68
        $region67: #{_graphormer_apply.1} parent=47 // pred_region
          %1324 = vsyncadd [#allocation5], 0
          %s1325 = sshll.u32 [#allocation6], 4
          %s1326 = int_to_ptr.vmem [resolvable:$true] %s1325
          %s1327 = sshll.u32 %s7, 4
          %s1328 = int_to_ptr.hbm [resolvable:$true] %s1327
          %1333 = dma.vmem_to_hbm [thread:$0]  %s1326, 2048, %s1328, [#allocation5], 128, 128, 8
        $region68: #{_graphormer_apply.1} parent=47 // pred_fallthru
          _
        // Predicated region
        $region69: #{_graphormer_apply.1} parent=47 // pred_check
          %p1334 = pneg %p202
        $region70: #{_graphormer_apply.1} parent=47 // pred_check_branch
          %1336 = sbr.rel (%p1334) target = $region72
        $region71: #{_graphormer_apply.1} parent=47 // pred_region
          %1338 = dma.done [#allocation5], 2048
        $region72: #{_graphormer_apply.1} parent=47 // pred_fallthru
          _
      $region48: #{_graphormer_apply.1} parent=5 // pred_fallthru
        _
      %p1339 = scmp.le.s32.totalorder 2, %s17
      // Predicated region
      $region73: #{_graphormer_apply.1} parent=5 // pred_check
        %p1340 = pneg %p1339
      $region74: #{_graphormer_apply.1} parent=5 // pred_check_branch
        %1342 = sbr.rel (%p1340) target = $region76
      $region75: #{_graphormer_apply.1} parent=5 // pred_region
        %s1343 = ssub.s32 %s17, 2
      $region76: #{_graphormer_apply.1} parent=5 // pred_fallthru
        _
    $region6: #{_graphormer_apply.1} parent=1 // loop_footer
      %s21 = sadd.s32 1, %s17
    $region7: #{_graphormer_apply.1} parent=1 // loop_footer_branch
      %16 = sbr.rel target = $region3
    $region8: #{_graphormer_apply.1} parent=1 // loop_exit
      _
    %1344 = vsyncpa [#allocation4], 1
    %s1345 = scalar_lea.sflag [#allocation4], 1
    %1346 = vsyncpa %s1345, 1
    %1347 = vsyncpa [#allocation5], 1
    %s1348 = scalar_lea.sflag [#allocation5], 1
    %1349 = vsyncpa %s1348, 1

</llo_original>
